<compile_context>
chip_gen: v5e
topology: v5e:2x2
jax: 0.10.0
libtpu: 0.0.40
codegen_flags: <defaults>
</compile_context>

<pallas_src>
import functools

import jax
import jax.numpy as jnp
from jax.experimental import pallas as pl
from jax.experimental.pallas import tpu as pltpu


def _mha_kernel(q_ref, k_ref, v_ref,
                wq_ref, wk_ref, wv_ref, wfc_ref,
                gamma_ref, beta_ref,
                out_ref,
                *, n_head, d_k, d_v, eps):
    Bb, Lq, D = q_ref.shape
    _, Lk, _ = k_ref.shape
    _, Lv, _ = v_ref.shape
    H = n_head
    BH = Bb * H

    q_in = q_ref[...]                                   # (Bb, Lq, D)

    # --- Q/K/V projections: single packed 2-D MXU matmuls (no replication) ---
    inv_temp = 1.0 / (d_k ** 0.5)
    q2 = q_in.reshape(Bb * Lq, D)
    k2 = k_ref[...].reshape(Bb * Lk, D)
    v2 = v_ref[...].reshape(Bb * Lv, D)
    qh = jnp.dot(q2, wq_ref[...],
                 preferred_element_type=jnp.float32) * inv_temp   # (Bb*Lq, H*dk)
    kh = jnp.dot(k2, wk_ref[...],
                 preferred_element_type=jnp.float32)              # (Bb*Lk, H*dk)
    vh = jnp.dot(v2, wv_ref[...],
                 preferred_element_type=jnp.float32)              # (Bb*Lv, H*dv)

    # --- split heads only now, fuse (batch, head) into one leading batch dim ---
    qh = qh.reshape(Bb, Lq, H, d_k).transpose(0, 2, 1, 3).reshape(BH, Lq, d_k)
    kh = kh.reshape(Bb, Lk, H, d_k).transpose(0, 2, 1, 3).reshape(BH, Lk, d_k)
    vh = vh.reshape(Bb, Lv, H, d_v).transpose(0, 2, 1, 3).reshape(BH, Lv, d_v)

    # --- scaled dot-product attention, batched over (batch*head) ---
    scores = jnp.einsum('bqd,bkd->bqk', qh, kh,
                        preferred_element_type=jnp.float32)       # (BH, Lq, Lk)
    m = jnp.max(scores, axis=-1, keepdims=True)
    e = jnp.exp(scores - m)
    p = e / jnp.sum(e, axis=-1, keepdims=True)     # exact divide (correctness)
    o = jnp.einsum('bqk,bkd->bqd', p, vh,
                   preferred_element_type=jnp.float32)            # (BH, Lq, dv)

    # --- output projection: regroup heads to concat layout, one packed matmul
    #     (the sum over heads happens inside the MXU contraction) ---
    o_cat = (o.reshape(Bb, H, Lq, d_v)
               .transpose(0, 2, 1, 3)
               .reshape(Bb * Lq, H * d_v))                        # (Bb*Lq, H*dv)
    proj = jnp.dot(o_cat, wfc_ref[...],
                   preferred_element_type=jnp.float32).reshape(Bb, Lq, D)

    # --- residual add + LayerNorm(d_model, eps=1e-6) ---
    x = proj + q_in
    mean = jnp.mean(x, axis=-1, keepdims=True)
    xc = x - mean
    var = jnp.mean(xc * xc, axis=-1, keepdims=True)
    inv_std = jax.lax.rsqrt(var + eps)
    y = xc * inv_std * gamma_ref[...] + beta_ref[...]             # (1,1,D) broadcast

    out_ref[...] = y.astype(out_ref.dtype)


def multi_head_attention(q, k, v, wq, wk, wv, wfc, gamma, beta,
                         *, n_head, d_k, d_v, eps=1e-6, batch_block=None):
    B, Lq, D = q.shape
    _, Lk, _ = k.shape
    _, Lv, _ = v.shape

    Bb = B if batch_block is None else batch_block
    assert B % Bb == 0, "batch_block must divide batch"
    grid = (B // Bb,)   # one step for the whole (tiny) batch by default;
                        # pass batch_block = B // 2 on v7x for 2-TC sharding.

    gamma3 = gamma.reshape(1, 1, D)
    beta3 = beta.reshape(1, 1, D)

    kernel = functools.partial(_mha_kernel, n_head=n_head, d_k=d_k, d_v=d_v, eps=eps)

    return pl.pallas_call(
        kernel,
        out_shape=jax.ShapeDtypeStruct((B, Lq, D), q.dtype),
        grid_spec=pltpu.PrefetchScalarGridSpec(
            num_scalar_prefetch=0,
            grid=grid,
            in_specs=[
                pl.BlockSpec((Bb, Lq, D), lambda i: (i, 0, 0)),
                pl.BlockSpec((Bb, Lk, D), lambda i: (i, 0, 0)),
                pl.BlockSpec((Bb, Lv, D), lambda i: (i, 0, 0)),
                pl.BlockSpec((D, n_head * d_k), lambda i: (0, 0)),   # packed w_q
                pl.BlockSpec((D, n_head * d_k), lambda i: (0, 0)),   # packed w_k
                pl.BlockSpec((D, n_head * d_v), lambda i: (0, 0)),   # packed w_v
                pl.BlockSpec((n_head * d_v, D), lambda i: (0, 0)),   # packed fc
                pl.BlockSpec((1, 1, D), lambda i: (0, 0, 0)),
                pl.BlockSpec((1, 1, D), lambda i: (0, 0, 0)),
            ],
            out_specs=pl.BlockSpec((Bb, Lq, D), lambda i: (i, 0, 0)),
        ),
        compiler_params=pltpu.CompilerParams(
            dimension_semantics=("parallel",)),
    )(q, k, v, wq, wk, wv, wfc, gamma3, beta3)


def _reference(q, k, v, wq, wk, wv, wfc, gamma, beta, *, n_head, d_k, d_v, eps=1e-6):
    """Pure-JAX reference mirroring the PyTorch forward (eval mode)."""
    B, Lq, D = q.shape
    Lk = k.shape[1]
    Lv = v.shape[1]
    residual = q
    qp = (q @ wq).reshape(B, Lq, n_head, d_k).transpose(0, 2, 1, 3)
    kp = (k @ wk).reshape(B, Lk, n_head, d_k).transpose(0, 2, 1, 3)
    vp = (v @ wv).reshape(B, Lv, n_head, d_v).transpose(0, 2, 1, 3)
    attn = jnp.einsum("bhqd,bhkd->bhqk", qp / (d_k ** 0.5), kp)
    attn = jax.nn.softmax(attn, axis=-1)
    out = jnp.einsum("bhqk,bhkd->bhqd", attn, vp)
    out = out.transpose(0, 2, 1, 3).reshape(B, Lq, n_head * d_v)
    out = out @ wfc + residual
    mean = jnp.mean(out, axis=-1, keepdims=True)
    var = jnp.mean((out - mean) ** 2, axis=-1, keepdims=True)
    return (out - mean) / jnp.sqrt(var + eps) * gamma + beta


if __name__ == "__main__":
    # Small, module-consistent shapes.
    B, L, d_model = 2, 8, 32
    n_head, d_k, d_v = 4, 8, 8

    key = jax.random.PRNGKey(0)
    kq, kk, kv, kwq, kwk, kwv, kwfc = jax.random.split(key, 7)

    q = jax.random.normal(kq, (B, L, d_model), dtype=jnp.float32)
    k = jax.random.normal(kk, (B, L, d_model), dtype=jnp.float32)
    v = jax.random.normal(kv, (B, L, d_model), dtype=jnp.float32)

    # Deterministic synthetic weights, stored as (in, out).
    scale = 1.0 / jnp.sqrt(d_model)
    wq = jax.random.normal(kwq, (d_model, n_head * d_k), dtype=jnp.float32) * scale
    wk = jax.random.normal(kwk, (d_model, n_head * d_k), dtype=jnp.float32) * scale
    wv = jax.random.normal(kwv, (d_model, n_head * d_v), dtype=jnp.float32) * scale
    wfc = jax.random.normal(kwfc, (n_head * d_v, d_model), dtype=jnp.float32) * scale

    # LayerNorm params (PyTorch default init: weight=1, bias=0).
    gamma = jnp.ones((d_model,), dtype=jnp.float32)
    beta = jnp.zeros((d_model,), dtype=jnp.float32)

    out = multi_head_attention(q, k, v, wq, wk, wv, wfc, gamma, beta,
                               n_head=n_head, d_k=d_k, d_v=d_v)
    out = jax.block_until_ready(out)

    ref = _reference(q, k, v, wq, wk, wv, wfc, gamma, beta,
                     n_head=n_head, d_k=d_k, d_v=d_v)
    assert out.shape == (B, L, d_model)
    assert jnp.allclose(out, ref, atol=1e-3, rtol=1e-3)

    print("KERNEL_OK")
</pallas_src>

<mosaic_0001>
module attributes {stable_mosaic.version = 11 : i64} {
  func.func @_mha_kernel(%arg0: i32, %arg1: memref<2x8x32xf32, #tpu.memory_space<vmem>>, %arg2: memref<2x8x32xf32, #tpu.memory_space<vmem>>, %arg3: memref<2x8x32xf32, #tpu.memory_space<vmem>>, %arg4: memref<32x32xf32, #tpu.memory_space<vmem>>, %arg5: memref<32x32xf32, #tpu.memory_space<vmem>>, %arg6: memref<32x32xf32, #tpu.memory_space<vmem>>, %arg7: memref<32x32xf32, #tpu.memory_space<vmem>>, %arg8: memref<1x1x32xf32, #tpu.memory_space<vmem>>, %arg9: memref<1x1x32xf32, #tpu.memory_space<vmem>>, %arg10: memref<2x8x32xf32, #tpu.memory_space<vmem>>) attributes {dimension_semantics = [#tpu.dimension_semantics<parallel>], iteration_bounds = array<i64: 1>, scalar_prefetch = 0 : i64, scratch_operands = 0 : i64, tpu.core_type = #tpu.core_type<tc>, window_params = [{transform_indices = @transform_0, window_bounds = array<i64: 2, 8, 32>}, {transform_indices = @transform_1, window_bounds = array<i64: 2, 8, 32>}, {transform_indices = @transform_2, window_bounds = array<i64: 2, 8, 32>}, {pipeline_mode = #tpu.pipeline_mode<synchronous>, transform_indices = @transform_3, window_bounds = array<i64: 32, 32>}, {pipeline_mode = #tpu.pipeline_mode<synchronous>, transform_indices = @transform_4, window_bounds = array<i64: 32, 32>}, {pipeline_mode = #tpu.pipeline_mode<synchronous>, transform_indices = @transform_5, window_bounds = array<i64: 32, 32>}, {pipeline_mode = #tpu.pipeline_mode<synchronous>, transform_indices = @transform_6, window_bounds = array<i64: 32, 32>}, {pipeline_mode = #tpu.pipeline_mode<synchronous>, transform_indices = @transform_7, window_bounds = array<i64: 1, 1, 32>}, {pipeline_mode = #tpu.pipeline_mode<synchronous>, transform_indices = @transform_8, window_bounds = array<i64: 1, 1, 32>}, {transform_indices = @transform_9, window_bounds = array<i64: 2, 8, 32>}]} {
    %c0 = arith.constant 0 : index
    %c0_0 = arith.constant 0 : index
    %c0_1 = arith.constant 0 : index
    %0 = vector.load %arg1[%c0, %c0_0, %c0_1] : memref<2x8x32xf32, #tpu.memory_space<vmem>>, vector<2x8x32xf32>
    %1 = vector.shape_cast %0 : vector<2x8x32xf32> to vector<16x32xf32>
    %c0_2 = arith.constant 0 : index
    %c0_3 = arith.constant 0 : index
    %c0_4 = arith.constant 0 : index
    %2 = vector.load %arg2[%c0_2, %c0_3, %c0_4] : memref<2x8x32xf32, #tpu.memory_space<vmem>>, vector<2x8x32xf32>
    %3 = vector.shape_cast %2 : vector<2x8x32xf32> to vector<16x32xf32>
    %c0_5 = arith.constant 0 : index
    %c0_6 = arith.constant 0 : index
    %c0_7 = arith.constant 0 : index
    %4 = vector.load %arg3[%c0_5, %c0_6, %c0_7] : memref<2x8x32xf32, #tpu.memory_space<vmem>>, vector<2x8x32xf32>
    %5 = vector.shape_cast %4 : vector<2x8x32xf32> to vector<16x32xf32>
    %c0_8 = arith.constant 0 : index
    %c0_9 = arith.constant 0 : index
    %6 = vector.load %arg4[%c0_8, %c0_9] : memref<32x32xf32, #tpu.memory_space<vmem>>, vector<32x32xf32>
    %cst = arith.constant dense<0.000000e+00> : vector<16x32xf32>
    %7 = tpu.matmul %1, %6, %cst {dimension_numbers = #tpu.dot_dimension_numbers<[1], [0], [0], [1], [0, 0, 1, 1], [], []>} : vector<16x32xf32>, vector<32x32xf32>, vector<16x32xf32> -> vector<16x32xf32>
    %cst_10 = arith.constant 0.353553385 : f32
    %8 = vector.broadcast %cst_10 : f32 to vector<16x32xf32>
    %9 = arith.mulf %7, %8 : vector<16x32xf32>
    %c0_11 = arith.constant 0 : index
    %c0_12 = arith.constant 0 : index
    %10 = vector.load %arg5[%c0_11, %c0_12] : memref<32x32xf32, #tpu.memory_space<vmem>>, vector<32x32xf32>
    %cst_13 = arith.constant dense<0.000000e+00> : vector<16x32xf32>
    %11 = tpu.matmul %3, %10, %cst_13 {dimension_numbers = #tpu.dot_dimension_numbers<[1], [0], [0], [1], [0, 0, 1, 1], [], []>} : vector<16x32xf32>, vector<32x32xf32>, vector<16x32xf32> -> vector<16x32xf32>
    %c0_14 = arith.constant 0 : index
    %c0_15 = arith.constant 0 : index
    %12 = vector.load %arg6[%c0_14, %c0_15] : memref<32x32xf32, #tpu.memory_space<vmem>>, vector<32x32xf32>
    %cst_16 = arith.constant dense<0.000000e+00> : vector<16x32xf32>
    %13 = tpu.matmul %5, %12, %cst_16 {dimension_numbers = #tpu.dot_dimension_numbers<[1], [0], [0], [1], [0, 0, 1, 1], [], []>} : vector<16x32xf32>, vector<32x32xf32>, vector<16x32xf32> -> vector<16x32xf32>
    %14 = vector.shape_cast %9 : vector<16x32xf32> to vector<2x8x4x8xf32>
    %15 = tpu.transpose %14, [0, 2, 1, 3] : vector<2x8x4x8xf32> -> vector<2x4x8x8xf32>
    %16 = vector.shape_cast %15 : vector<2x4x8x8xf32> to vector<8x8x8xf32>
    %17 = vector.shape_cast %11 : vector<16x32xf32> to vector<2x8x4x8xf32>
    %18 = tpu.transpose %17, [0, 2, 1, 3] : vector<2x8x4x8xf32> -> vector<2x4x8x8xf32>
    %19 = vector.shape_cast %18 : vector<2x4x8x8xf32> to vector<8x8x8xf32>
    %20 = vector.shape_cast %13 : vector<16x32xf32> to vector<2x8x4x8xf32>
    %21 = tpu.transpose %20, [0, 2, 1, 3] : vector<2x8x4x8xf32> -> vector<2x4x8x8xf32>
    %22 = vector.shape_cast %21 : vector<2x4x8x8xf32> to vector<8x8x8xf32>
    "tpu.trace_start"() <{level = 10 : i32, message = "bqd,bkd->bqk"}> : () -> ()
    %cst_17 = arith.constant dense<0.000000e+00> : vector<8x8x8xf32>
    %23 = tpu.matmul %16, %19, %cst_17 {dimension_numbers = #tpu.dot_dimension_numbers<[2], [2], [1], [1], [0, 0, 0, 1, 1, 1], [0], [0]>} : vector<8x8x8xf32>, vector<8x8x8xf32>, vector<8x8x8xf32> -> vector<8x8x8xf32>
    "tpu.trace_stop"() : () -> ()
    %cst_18 = arith.constant dense<0xFF800000> : vector<8x8xf32>
    %24 = vector.multi_reduction <maximumf>, %23, %cst_18 [2] : vector<8x8x8xf32> to vector<8x8xf32>
    %25 = vector.shape_cast %24 : vector<8x8xf32> to vector<8x8x1xf32>
    %26 = vector.broadcast %25 : vector<8x8x1xf32> to vector<8x8x8xf32>
    %27 = arith.subf %23, %26 : vector<8x8x8xf32>
    %28 = math.exp %27 : vector<8x8x8xf32>
    %cst_19 = arith.constant dense<0.000000e+00> : vector<8x8xf32>
    %29 = vector.multi_reduction <add>, %28, %cst_19 [2] : vector<8x8x8xf32> to vector<8x8xf32>
    %30 = vector.shape_cast %29 : vector<8x8xf32> to vector<8x8x1xf32>
    %31 = vector.broadcast %30 : vector<8x8x1xf32> to vector<8x8x8xf32>
    %32 = arith.divf %28, %31 : vector<8x8x8xf32>
    "tpu.trace_start"() <{level = 10 : i32, message = "bqk,bkd->bqd"}> : () -> ()
    %cst_20 = arith.constant dense<0.000000e+00> : vector<8x8x8xf32>
    %33 = tpu.matmul %32, %22, %cst_20 {dimension_numbers = #tpu.dot_dimension_numbers<[2], [1], [1], [2], [0, 0, 0, 1, 1, 2], [0], [0]>} : vector<8x8x8xf32>, vector<8x8x8xf32>, vector<8x8x8xf32> -> vector<8x8x8xf32>
    "tpu.trace_stop"() : () -> ()
    %34 = vector.shape_cast %33 : vector<8x8x8xf32> to vector<2x4x8x8xf32>
    %35 = tpu.transpose %34, [0, 2, 1, 3] : vector<2x4x8x8xf32> -> vector<2x8x4x8xf32>
    %36 = vector.shape_cast %35 : vector<2x8x4x8xf32> to vector<16x32xf32>
    %c0_21 = arith.constant 0 : index
    %c0_22 = arith.constant 0 : index
    %37 = vector.load %arg7[%c0_21, %c0_22] : memref<32x32xf32, #tpu.memory_space<vmem>>, vector<32x32xf32>
    %cst_23 = arith.constant dense<0.000000e+00> : vector<16x32xf32>
    %38 = tpu.matmul %36, %37, %cst_23 {dimension_numbers = #tpu.dot_dimension_numbers<[1], [0], [0], [1], [0, 0, 1, 1], [], []>} : vector<16x32xf32>, vector<32x32xf32>, vector<16x32xf32> -> vector<16x32xf32>
    %39 = vector.shape_cast %38 : vector<16x32xf32> to vector<2x8x32xf32>
    %40 = arith.addf %39, %0 : vector<2x8x32xf32>
    %cst_24 = arith.constant dense<0.000000e+00> : vector<2x8xf32>
    %41 = vector.multi_reduction <add>, %40, %cst_24 [2] : vector<2x8x32xf32> to vector<2x8xf32>
    %42 = vector.shape_cast %41 : vector<2x8xf32> to vector<2x8x1xf32>
    %cst_25 = arith.constant 3.200000e+01 : f32
    %43 = vector.broadcast %cst_25 : f32 to vector<2x8x1xf32>
    %44 = arith.divf %42, %43 : vector<2x8x1xf32>
    %45 = vector.broadcast %44 : vector<2x8x1xf32> to vector<2x8x32xf32>
    %46 = arith.subf %40, %45 : vector<2x8x32xf32>
    %47 = arith.mulf %46, %46 : vector<2x8x32xf32>
    %cst_26 = arith.constant dense<0.000000e+00> : vector<2x8xf32>
    %48 = vector.multi_reduction <add>, %47, %cst_26 [2] : vector<2x8x32xf32> to vector<2x8xf32>
    %49 = vector.shape_cast %48 : vector<2x8xf32> to vector<2x8x1xf32>
    %cst_27 = arith.constant 3.200000e+01 : f32
    %50 = vector.broadcast %cst_27 : f32 to vector<2x8x1xf32>
    %51 = arith.divf %49, %50 : vector<2x8x1xf32>
    %cst_28 = arith.constant 9.99999997E-7 : f32
    %52 = vector.broadcast %cst_28 : f32 to vector<2x8x1xf32>
    %53 = arith.addf %51, %52 : vector<2x8x1xf32>
    %54 = math.rsqrt %53 : vector<2x8x1xf32>
    %55 = vector.broadcast %54 : vector<2x8x1xf32> to vector<2x8x32xf32>
    %56 = arith.mulf %46, %55 : vector<2x8x32xf32>
    %c0_29 = arith.constant 0 : index
    %c0_30 = arith.constant 0 : index
    %c0_31 = arith.constant 0 : index
    %57 = vector.load %arg8[%c0_29, %c0_30, %c0_31] : memref<1x1x32xf32, #tpu.memory_space<vmem>>, vector<1x1x32xf32>
    %58 = vector.broadcast %57 : vector<1x1x32xf32> to vector<2x8x32xf32>
    %59 = arith.mulf %56, %58 : vector<2x8x32xf32>
    %c0_32 = arith.constant 0 : index
    %c0_33 = arith.constant 0 : index
    %c0_34 = arith.constant 0 : index
    %60 = vector.load %arg9[%c0_32, %c0_33, %c0_34] : memref<1x1x32xf32, #tpu.memory_space<vmem>>, vector<1x1x32xf32>
    %61 = vector.broadcast %60 : vector<1x1x32xf32> to vector<2x8x32xf32>
    %62 = arith.addf %59, %61 : vector<2x8x32xf32>
    %c0_35 = arith.constant 0 : index
    %c0_36 = arith.constant 0 : index
    %c0_37 = arith.constant 0 : index
    %63 = vector.load %arg10[%c0_35, %c0_36, %c0_37] : memref<2x8x32xf32, #tpu.memory_space<vmem>>, vector<2x8x32xf32>
    tpu.vector_store %arg10[%c0_35, %c0_36, %c0_37], %62 {strides = array<i32>} : memref<2x8x32xf32, #tpu.memory_space<vmem>>, vector<2x8x32xf32>,
    return
  }
  func.func @transform_0(%arg0: i32) -> (i32, i32, i32) {
    %c0_i32 = arith.constant 0 : i32
    %c0_i32_0 = arith.constant 0 : i32
    %c0_i32_1 = arith.constant 0 : i32
    return %arg0, %c0_i32, %c0_i32_0 : i32, i32, i32
  }
  func.func @transform_1(%arg0: i32) -> (i32, i32, i32) {
    %c0_i32 = arith.constant 0 : i32
    %c0_i32_0 = arith.constant 0 : i32
    %c0_i32_1 = arith.constant 0 : i32
    return %arg0, %c0_i32, %c0_i32_0 : i32, i32, i32
  }
  func.func @transform_2(%arg0: i32) -> (i32, i32, i32) {
    %c0_i32 = arith.constant 0 : i32
    %c0_i32_0 = arith.constant 0 : i32
    %c0_i32_1 = arith.constant 0 : i32
    return %arg0, %c0_i32, %c0_i32_0 : i32, i32, i32
  }
  func.func @transform_3(%arg0: i32) -> (i32, i32) {
    %c0_i32 = arith.constant 0 : i32
    %c0_i32_0 = arith.constant 0 : i32
    %c0_i32_1 = arith.constant 0 : i32
    return %c0_i32, %c0_i32_0 : i32, i32
  }
  func.func @transform_4(%arg0: i32) -> (i32, i32) {
    %c0_i32 = arith.constant 0 : i32
    %c0_i32_0 = arith.constant 0 : i32
    %c0_i32_1 = arith.constant 0 : i32
    return %c0_i32, %c0_i32_0 : i32, i32
  }
  func.func @transform_5(%arg0: i32) -> (i32, i32) {
    %c0_i32 = arith.constant 0 : i32
    %c0_i32_0 = arith.constant 0 : i32
    %c0_i32_1 = arith.constant 0 : i32
    return %c0_i32, %c0_i32_0 : i32, i32
  }
  func.func @transform_6(%arg0: i32) -> (i32, i32) {
    %c0_i32 = arith.constant 0 : i32
    %c0_i32_0 = arith.constant 0 : i32
    %c0_i32_1 = arith.constant 0 : i32
    return %c0_i32, %c0_i32_0 : i32, i32
  }
  func.func @transform_7(%arg0: i32) -> (i32, i32, i32) {
    %c0_i32 = arith.constant 0 : i32
    %c0_i32_0 = arith.constant 0 : i32
    %c0_i32_1 = arith.constant 0 : i32
    %c0_i32_2 = arith.constant 0 : i32
    return %c0_i32, %c0_i32_0, %c0_i32_1 : i32, i32, i32
  }
  func.func @transform_8(%arg0: i32) -> (i32, i32, i32) {
    %c0_i32 = arith.constant 0 : i32
    %c0_i32_0 = arith.constant 0 : i32
    %c0_i32_1 = arith.constant 0 : i32
    %c0_i32_2 = arith.constant 0 : i32
    return %c0_i32, %c0_i32_0, %c0_i32_1 : i32, i32, i32
  }
  func.func @transform_9(%arg0: i32) -> (i32, i32, i32) {
    %c0_i32 = arith.constant 0 : i32
    %c0_i32_0 = arith.constant 0 : i32
    %c0_i32_1 = arith.constant 0 : i32
    return %arg0, %c0_i32, %c0_i32_0 : i32, i32, i32
  }
}

</mosaic_0001>

<llo_original>
// kernel: tpu_custom_call.1
$region0: #{tpu_custom_call.1}
  #allocation0 [shape = 'u32[]', space=smem, size = 0x4, offset = 0x4, fixed_abs, tag = 'smem constant byte address 0x4 - core index']
  #allocation1 [shape = 'u32[72,128]{1,0:T(1,128)}', space=vmem, size = 0x9000, scoped, tag = 'internal scratch']
  %s0 = inlined_call_operand.hbm [shape: f32[2,8,32], index: 0, kind: input, shape index: {}]
  %s1 = inlined_call_operand.hbm [shape: f32[2,8,32], index: 1, kind: input, shape index: {}]
  %s2 = inlined_call_operand.hbm [shape: f32[2,8,32], index: 2, kind: input, shape index: {}]
  %s3 = inlined_call_operand.hbm [shape: f32[32,32], index: 3, kind: input, shape index: {}]
  %s4 = inlined_call_operand.hbm [shape: f32[32,32], index: 4, kind: input, shape index: {}]
  %s5 = inlined_call_operand.hbm [shape: f32[32,32], index: 5, kind: input, shape index: {}]
  %s6 = inlined_call_operand.hbm [shape: f32[32,32], index: 6, kind: input, shape index: {}]
  %s7 = inlined_call_operand.vmem [shape: f32[1,1,32], index: 7, kind: input, shape index: {}]
  %s8 = inlined_call_operand.vmem [shape: f32[1,1,32], index: 8, kind: input, shape index: {}]
  %s9 = inlined_call_operand.hbm [shape: f32[2,8,32], index: 9, kind: output, shape index: {}]
  %s10 = sld [smem:[#allocation0]]
  $region74: #{tpu_custom_call.1} parent=0
    _
  %s12 = ssub.s32 1, %s10
  %s13 = scalar_select 0, %s12, %s10
  $region1: #{tpu_custom_call.1} parent=0
    #allocation2 [shape = 'u8[8192]{0}', space=vmem, size = 0x2000, scoped, tag = 'input window, operand 0, single buffered']
    #allocation3 [shape = 's32[1]{0}', space=sflag, size = 0x4, scoped, tag = 'scoped memory for tpu_custom_call.1']
    #allocation4 [shape = 's32[1]{0}', space=sflag, size = 0x4, scoped, tag = 'scoped memory for tpu_custom_call.1']
    #allocation5 [shape = 'u8[8192]{0}', space=vmem, size = 0x2000, scoped, tag = 'input window, operand 1, single buffered']
    #allocation6 [shape = 's32[1]{0}', space=sflag, size = 0x4, scoped, tag = 'scoped memory for tpu_custom_call.1']
    #allocation7 [shape = 'u8[8192]{0}', space=vmem, size = 0x2000, scoped, tag = 'input window, operand 2, single buffered']
    #allocation8 [shape = 'u8[16384]{0}', space=vmem, size = 0x4000, scoped, tag = 'input window, operand 3, single buffered']
    #allocation9 [shape = 's32[1]{0}', space=sflag, size = 0x4, scoped, tag = 'scoped memory for tpu_custom_call.1']
    #allocation10 [shape = 'u8[16384]{0}', space=vmem, size = 0x4000, scoped, tag = 'input window, operand 4, single buffered']
    #allocation11 [shape = 'u8[16384]{0}', space=vmem, size = 0x4000, scoped, tag = 'input window, operand 5, single buffered']
    #allocation12 [shape = 's32[1]{0}', space=sflag, size = 0x4, scoped, tag = 'scoped memory for tpu_custom_call.1']
    #allocation13 [shape = 'u8[16384]{0}', space=vmem, size = 0x4000, scoped, tag = 'input window, operand 6, single buffered']
    #allocation14 [shape = 'u8[8192]{0}', space=vmem, size = 0x2000, scoped, tag = 'output window, operand 0, single buffered']
    %14 = vsyncpa [#allocation3], 0
    %15 = vsyncpa [#allocation6], 0
    %16 = vsyncpa [#allocation9], 0
    %17 = vsyncpa [#allocation12], 0
    %18 = vsyncpa [#allocation4], 0
    // Predicated region
    $region2: #{tpu_custom_call.1} parent=1 // pred_check
      _
    $region3: #{tpu_custom_call.1} parent=1 // pred_check_branch
      %20 = sbr.rel (0) target = $region5
    $region4: #{tpu_custom_call.1} parent=1 // pred_region
      %22 = vsyncadd [#allocation3], 0
      %s23 = sshll.u32 %s0, 4
      %s24 = int_to_ptr.hbm [resolvable:$true] %s23
      %s25 = sshll.u32 [#allocation2], 4
      %s26 = int_to_ptr.vmem [resolvable:$true] %s25
      %31 = dma.hbm_to_vmem [thread:$0]  %s24, 256, %s26, [#allocation3], 128, 128, 8
    $region5: #{tpu_custom_call.1} parent=1 // pred_fallthru
      _
    // Predicated region
    $region6: #{tpu_custom_call.1} parent=1 // pred_check
      _
    $region7: #{tpu_custom_call.1} parent=1 // pred_check_branch
      %33 = sbr.rel (0) target = $region9
    $region8: #{tpu_custom_call.1} parent=1 // pred_region
      %35 = vsyncadd [#allocation6], 0
      %s36 = sshll.u32 %s1, 4
      %s37 = int_to_ptr.hbm [resolvable:$true] %s36
      %s38 = sshll.u32 [#allocation5], 4
      %s39 = int_to_ptr.vmem [resolvable:$true] %s38
      %44 = dma.hbm_to_vmem [thread:$0]  %s37, 256, %s39, [#allocation6], 128, 128, 8
    $region9: #{tpu_custom_call.1} parent=1 // pred_fallthru
      _
    // Predicated region
    $region10: #{tpu_custom_call.1} parent=1 // pred_check
      _
    $region11: #{tpu_custom_call.1} parent=1 // pred_check_branch
      %46 = sbr.rel (0) target = $region13
    $region12: #{tpu_custom_call.1} parent=1 // pred_region
      %48 = vsyncadd [#allocation6], 0
      %s49 = sshll.u32 %s2, 4
      %s50 = int_to_ptr.hbm [resolvable:$true] %s49
      %s51 = sshll.u32 [#allocation7], 4
      %s52 = int_to_ptr.vmem [resolvable:$true] %s51
      %57 = dma.hbm_to_vmem [thread:$0]  %s50, 256, %s52, [#allocation6], 128, 128, 8
    $region13: #{tpu_custom_call.1} parent=1 // pred_fallthru
      _
    // Predicated region
    $region14: #{tpu_custom_call.1} parent=1 // pred_check
      _
    $region15: #{tpu_custom_call.1} parent=1 // pred_check_branch
      %59 = sbr.rel (0) target = $region17
    $region16: #{tpu_custom_call.1} parent=1 // pred_region
      %61 = vsyncadd [#allocation9], 0
      %s62 = sshll.u32 %s3, 4
      %s63 = int_to_ptr.hbm [resolvable:$true] %s62
      %s64 = sshll.u32 [#allocation8], 4
      %s65 = int_to_ptr.vmem [resolvable:$true] %s64
      %70 = dma.hbm_to_vmem [thread:$0]  %s63, 512, %s65, [#allocation9], 128, 128, 8
    $region17: #{tpu_custom_call.1} parent=1 // pred_fallthru
      _
    // Predicated region
    $region18: #{tpu_custom_call.1} parent=1 // pred_check
      _
    $region19: #{tpu_custom_call.1} parent=1 // pred_check_branch
      %72 = sbr.rel (0) target = $region21
    $region20: #{tpu_custom_call.1} parent=1 // pred_region
      %74 = vsyncadd [#allocation9], 0
      %s75 = sshll.u32 %s4, 4
      %s76 = int_to_ptr.hbm [resolvable:$true] %s75
      %s77 = sshll.u32 [#allocation10], 4
      %s78 = int_to_ptr.vmem [resolvable:$true] %s77
      %83 = dma.hbm_to_vmem [thread:$0]  %s76, 512, %s78, [#allocation9], 128, 128, 8
    $region21: #{tpu_custom_call.1} parent=1 // pred_fallthru
      _
    // Predicated region
    $region22: #{tpu_custom_call.1} parent=1 // pred_check
      _
    $region23: #{tpu_custom_call.1} parent=1 // pred_check_branch
      %85 = sbr.rel (0) target = $region25
    $region24: #{tpu_custom_call.1} parent=1 // pred_region
      %87 = vsyncadd [#allocation12], 0
      %s88 = sshll.u32 %s5, 4
      %s89 = int_to_ptr.hbm [resolvable:$true] %s88
      %s90 = sshll.u32 [#allocation11], 4
      %s91 = int_to_ptr.vmem [resolvable:$true] %s90
      %96 = dma.hbm_to_vmem [thread:$0]  %s89, 512, %s91, [#allocation12], 128, 128, 8
    $region25: #{tpu_custom_call.1} parent=1 // pred_fallthru
      _
    // Predicated region
    $region26: #{tpu_custom_call.1} parent=1 // pred_check
      _
    $region27: #{tpu_custom_call.1} parent=1 // pred_check_branch
      %98 = sbr.rel (0) target = $region29
    $region28: #{tpu_custom_call.1} parent=1 // pred_region
      %100 = vsyncadd [#allocation12], 0
      %s101 = sshll.u32 %s6, 4
      %s102 = int_to_ptr.hbm [resolvable:$true] %s101
      %s103 = sshll.u32 [#allocation13], 4
      %s104 = int_to_ptr.vmem [resolvable:$true] %s103
      %109 = dma.hbm_to_vmem [thread:$0]  %s102, 512, %s104, [#allocation12], 128, 128, 8
    $region29: #{tpu_custom_call.1} parent=1 // pred_fallthru
      _
    // Predicated region
    $region30: #{tpu_custom_call.1} parent=1 // pred_check
      _
    $region31: #{tpu_custom_call.1} parent=1 // pred_check_branch
      %111 = sbr.rel (0) target = $region33
    $region32: #{tpu_custom_call.1} parent=1 // pred_region
      _
    $region33: #{tpu_custom_call.1} parent=1 // pred_fallthru
      _
    // Predicated region
    $region34: #{tpu_custom_call.1} parent=1 // pred_check
      _
    $region35: #{tpu_custom_call.1} parent=1 // pred_check_branch
      %113 = sbr.rel (0) target = $region37
    $region36: #{tpu_custom_call.1} parent=1 // pred_region
      _
    $region37: #{tpu_custom_call.1} parent=1 // pred_fallthru
      _
    // Predicated region
    $region38: #{tpu_custom_call.1} parent=1 // pred_check
      _
    $region39: #{tpu_custom_call.1} parent=1 // pred_check_branch
      %115 = sbr.rel (0) target = $region41
    $region40: #{tpu_custom_call.1} parent=1 // pred_region
      %117 = dma.done [#allocation3], 256
    $region41: #{tpu_custom_call.1} parent=1 // pred_fallthru
      _
    // Predicated region
    $region42: #{tpu_custom_call.1} parent=1 // pred_check
      _
    $region43: #{tpu_custom_call.1} parent=1 // pred_check_branch
      %119 = sbr.rel (0) target = $region45
    $region44: #{tpu_custom_call.1} parent=1 // pred_region
      %121 = dma.done [#allocation6], 256
    $region45: #{tpu_custom_call.1} parent=1 // pred_fallthru
      _
    // Predicated region
    $region46: #{tpu_custom_call.1} parent=1 // pred_check
      _
    $region47: #{tpu_custom_call.1} parent=1 // pred_check_branch
      %123 = sbr.rel (0) target = $region49
    $region48: #{tpu_custom_call.1} parent=1 // pred_region
      %125 = dma.done [#allocation6], 256
    $region49: #{tpu_custom_call.1} parent=1 // pred_fallthru
      _
    // Predicated region
    $region50: #{tpu_custom_call.1} parent=1 // pred_check
      _
    $region51: #{tpu_custom_call.1} parent=1 // pred_check_branch
      %127 = sbr.rel (0) target = $region53
    $region52: #{tpu_custom_call.1} parent=1 // pred_region
      %129 = dma.done [#allocation9], 512
    $region53: #{tpu_custom_call.1} parent=1 // pred_fallthru
      _
    // Predicated region
    $region54: #{tpu_custom_call.1} parent=1 // pred_check
      _
    $region55: #{tpu_custom_call.1} parent=1 // pred_check_branch
      %131 = sbr.rel (0) target = $region57
    $region56: #{tpu_custom_call.1} parent=1 // pred_region
      %133 = dma.done [#allocation9], 512
    $region57: #{tpu_custom_call.1} parent=1 // pred_fallthru
      _
    // Predicated region
    $region58: #{tpu_custom_call.1} parent=1 // pred_check
      _
    $region59: #{tpu_custom_call.1} parent=1 // pred_check_branch
      %135 = sbr.rel (0) target = $region61
    $region60: #{tpu_custom_call.1} parent=1 // pred_region
      %137 = dma.done [#allocation12], 512
    $region61: #{tpu_custom_call.1} parent=1 // pred_fallthru
      _
    // Predicated region
    $region62: #{tpu_custom_call.1} parent=1 // pred_check
      _
    $region63: #{tpu_custom_call.1} parent=1 // pred_check_branch
      %139 = sbr.rel (0) target = $region65
    $region64: #{tpu_custom_call.1} parent=1 // pred_region
      %141 = dma.done [#allocation12], 512
    $region65: #{tpu_custom_call.1} parent=1 // pred_fallthru
      _
    %v142 = vld [vmem:[#allocation2] sm:$0xff]
    %v143 = vld [vmem:[#allocation2 + $0x8] sm:$0xff]
    %v144 = vld [vmem:[#allocation5] sm:$0xff]
    %v145 = vld [vmem:[#allocation5 + $0x8] sm:$0xff]
    %v146 = vld [vmem:[#allocation7] sm:$0xff]
    %v147 = vld [vmem:[#allocation7 + $0x8] sm:$0xff]
    %v148 = vld [vmem:[#allocation8] sm:$0xff]
    %v149 = vld [vmem:[#allocation8 + $0x8] sm:$0xff]
    %v150 = vld [vmem:[#allocation8 + $0x10] sm:$0xff]
    %v151 = vld [vmem:[#allocation8 + $0x18] sm:$0xff]
    %vm152 = vcmask 261120
    %v154 = vsel %vm152, %v142, 0
    %v157 = vsel %vm152, %v143, 0
    %159 = vmatpush.msra.mxu0 0.0
    %160 = vmatpush.msra.mxu0 0.0
    %161 = vmatpush.msra.mxu0 0.0
    %162 = vmatpush.msra.mxu0 0.0
    %163 = vmatpush.msra.mxu0 0.0
    %164 = vmatpush.msra.mxu0 0.0
    %165 = vmatpush.msra.mxu0 0.0
    %166 = vmatpush.msra.mxu0 0.0
    %167 = vmatpush.msra.mxu0 0.0
    %168 = vmatpush.msra.mxu0 0.0
    %169 = vmatpush.msra.mxu0 0.0
    %170 = vmatpush.msra.mxu0 0.0
    %171 = vmatpush.msra.mxu0 %v151
    %172 = vmatpush.msra.mxu0 %v150
    %173 = vmatpush.msra.mxu0 %v149
    %174 = vmatpush.msra.mxu0 %v148
    %175 = vmatmul.f32.gmra.mxu0 %v154
    %v176 = vpop.f32.mrf.mxu0
    %v177 = vadd.f32 0.0, %v176
    %178 = vmatmul.f32.gmra.mxu0 %v157
    %v179 = vpop.f32.mrf.mxu0
    %v180 = vadd.f32 0.0, %v179
    %181 = vdwg.mxu0
    %v182 = vmul.f32 %v177, 0.35355338
    %v183 = vmul.f32 %v180, 0.35355338
    %v184 = vld [vmem:[#allocation10] sm:$0xff]
    %v185 = vld [vmem:[#allocation10 + $0x8] sm:$0xff]
    %v186 = vld [vmem:[#allocation10 + $0x10] sm:$0xff]
    %v187 = vld [vmem:[#allocation10 + $0x18] sm:$0xff]
    %v189 = vsel %vm152, %v144, 0
    %v192 = vsel %vm152, %v145, 0
    %194 = vmatpush.msra.mxu0 0.0
    %195 = vmatpush.msra.mxu0 0.0
    %196 = vmatpush.msra.mxu0 0.0
    %197 = vmatpush.msra.mxu0 0.0
    %198 = vmatpush.msra.mxu0 0.0
    %199 = vmatpush.msra.mxu0 0.0
    %200 = vmatpush.msra.mxu0 0.0
    %201 = vmatpush.msra.mxu0 0.0
    %202 = vmatpush.msra.mxu0 0.0
    %203 = vmatpush.msra.mxu0 0.0
    %204 = vmatpush.msra.mxu0 0.0
    %205 = vmatpush.msra.mxu0 0.0
    %206 = vmatpush.msra.mxu0 %v187
    %207 = vmatpush.msra.mxu0 %v186
    %208 = vmatpush.msra.mxu0 %v185
    %209 = vmatpush.msra.mxu0 %v184
    %210 = vmatmul.f32.gmra.mxu0 %v189
    %v211 = vpop.f32.mrf.mxu0
    %v212 = vadd.f32 0.0, %v211
    %213 = vmatmul.f32.gmra.mxu0 %v192
    %v214 = vpop.f32.mrf.mxu0
    %v215 = vadd.f32 0.0, %v214
    %216 = vdwg.mxu0
    %v217 = vld [vmem:[#allocation11] sm:$0xff]
    %v218 = vld [vmem:[#allocation11 + $0x8] sm:$0xff]
    %v219 = vld [vmem:[#allocation11 + $0x10] sm:$0xff]
    %v220 = vld [vmem:[#allocation11 + $0x18] sm:$0xff]
    %v222 = vsel %vm152, %v146, 0
    %v225 = vsel %vm152, %v147, 0
    %227 = vmatpush.msra.mxu0 0.0
    %228 = vmatpush.msra.mxu0 0.0
    %229 = vmatpush.msra.mxu0 0.0
    %230 = vmatpush.msra.mxu0 0.0
    %231 = vmatpush.msra.mxu0 0.0
    %232 = vmatpush.msra.mxu0 0.0
    %233 = vmatpush.msra.mxu0 0.0
    %234 = vmatpush.msra.mxu0 0.0
    %235 = vmatpush.msra.mxu0 0.0
    %236 = vmatpush.msra.mxu0 0.0
    %237 = vmatpush.msra.mxu0 0.0
    %238 = vmatpush.msra.mxu0 0.0
    %239 = vmatpush.msra.mxu0 %v220
    %240 = vmatpush.msra.mxu0 %v219
    %241 = vmatpush.msra.mxu0 %v218
    %242 = vmatpush.msra.mxu0 %v217
    %243 = vmatmul.f32.gmra.mxu0 %v222
    %v244 = vpop.f32.mrf.mxu0
    %v245 = vadd.f32 0.0, %v244
    %246 = vmatmul.f32.gmra.mxu0 %v225
    %v247 = vpop.f32.mrf.mxu0
    %v248 = vadd.f32 0.0, %v247
    %249 = vdwg.mxu0
    %252 = vrot.lane.b32.xlu0 %v182, 120
    %v253 = vpop.permute.xlu0 %252
    %254 = vrot.lane.b32.xlu0 %v183, 120
    %v255 = vpop.permute.xlu0 %254
    %258 = vrot.lane.b32.xlu0 %v182, 112
    %v259 = vpop.permute.xlu0 %258
    %260 = vrot.lane.b32.xlu0 %v183, 112
    %v261 = vpop.permute.xlu0 %260
    %264 = vrot.lane.b32.xlu0 %v182, 104
    %v265 = vpop.permute.xlu0 %264
    %266 = vrot.lane.b32.xlu0 %v183, 104
    %v267 = vpop.permute.xlu0 %266
    %v270 = vrot.slane %v259, 4
    %vm271 = vcmask 1047556
    %v272 = vsel %vm271, %v270, %v182
    %v273 = vrot.slane %v182, 4
    %v274 = vsel %vm271, %v259, %v273
    %v276 = vunpack.c.l.s4 1983009808
    %v277 = vunpack.c.0.s8 %v276
    %v278 = vperm.slane %v272, %v277
    %v280 = vunpack.c.l.s4 1983009808
    %v281 = vunpack.c.0.s8 %v280
    %v282 = vperm.slane %v274, %v281
    %v283 = vrot.slane %v265, 4
    %v284 = vsel %vm271, %v283, %v253
    %v285 = vrot.slane %v253, 4
    %v286 = vsel %vm271, %v265, %v285
    %v288 = vunpack.c.l.s4 1983009808
    %v289 = vunpack.c.0.s8 %v288
    %v290 = vperm.slane %v284, %v289
    %v292 = vunpack.c.l.s4 1983009808
    %v293 = vunpack.c.0.s8 %v292
    %v294 = vperm.slane %v286, %v293
    %v295 = vrot.slane %v290, 4
    %v296 = vsel %vm271, %v295, %v278
    %v297 = vrot.slane %v278, 4
    %v298 = vsel %vm271, %v290, %v297
    %v300 = vunpack.c.l.s4 1934713408
    %v301 = vunpack.c.0.s8 %v300
    %v302 = vperm.slane %v296, %v301
    %v304 = vunpack.c.l.s4 1934713408
    %v305 = vunpack.c.0.s8 %v304
    %v306 = vperm.slane %v298, %v305
    %v307 = vrot.slane %v294, 4
    %v308 = vsel %vm271, %v307, %v282
    %v309 = vrot.slane %v282, 4
    %v310 = vsel %vm271, %v294, %v309
    %v312 = vunpack.c.l.s4 1934713408
    %v313 = vunpack.c.0.s8 %v312
    %v314 = vperm.slane %v308, %v313
    %v316 = vunpack.c.l.s4 1934713408
    %v317 = vunpack.c.0.s8 %v316
    %v318 = vperm.slane %v310, %v317
    %v319 = vrot.slane %v302, 4
    %v320 = vsel %vm271, 0.0, %v319
    %v321 = vrot.slane %v306, 4
    %v322 = vsel %vm271, 0.0, %v321
    %v323 = vrot.slane %v314, 4
    %v324 = vsel %vm271, 0.0, %v323
    %v325 = vrot.slane %v318, 4
    %v326 = vsel %vm271, 0.0, %v325
    %v327 = vrot.slane %v261, 4
    %v328 = vsel %vm271, %v327, %v183
    %v329 = vrot.slane %v183, 4
    %v330 = vsel %vm271, %v261, %v329
    %v332 = vunpack.c.l.s4 1983009808
    %v333 = vunpack.c.0.s8 %v332
    %v334 = vperm.slane %v328, %v333
    %v336 = vunpack.c.l.s4 1983009808
    %v337 = vunpack.c.0.s8 %v336
    %v338 = vperm.slane %v330, %v337
    %v339 = vrot.slane %v267, 4
    %v340 = vsel %vm271, %v339, %v255
    %v341 = vrot.slane %v255, 4
    %v342 = vsel %vm271, %v267, %v341
    %v344 = vunpack.c.l.s4 1983009808
    %v345 = vunpack.c.0.s8 %v344
    %v346 = vperm.slane %v340, %v345
    %v348 = vunpack.c.l.s4 1983009808
    %v349 = vunpack.c.0.s8 %v348
    %v350 = vperm.slane %v342, %v349
    %v351 = vrot.slane %v346, 4
    %v352 = vsel %vm271, %v351, %v334
    %v353 = vrot.slane %v334, 4
    %v354 = vsel %vm271, %v346, %v353
    %v356 = vunpack.c.l.s4 1934713408
    %v357 = vunpack.c.0.s8 %v356
    %v358 = vperm.slane %v352, %v357
    %v360 = vunpack.c.l.s4 1934713408
    %v361 = vunpack.c.0.s8 %v360
    %v362 = vperm.slane %v354, %v361
    %v363 = vrot.slane %v350, 4
    %v364 = vsel %vm271, %v363, %v338
    %v365 = vrot.slane %v338, 4
    %v366 = vsel %vm271, %v350, %v365
    %v368 = vunpack.c.l.s4 1934713408
    %v369 = vunpack.c.0.s8 %v368
    %v370 = vperm.slane %v364, %v369
    %v372 = vunpack.c.l.s4 1934713408
    %v373 = vunpack.c.0.s8 %v372
    %v374 = vperm.slane %v366, %v373
    %v375 = vrot.slane %v358, 4
    %v376 = vsel %vm271, 0.0, %v375
    %v377 = vrot.slane %v362, 4
    %v378 = vsel %vm271, 0.0, %v377
    %v379 = vrot.slane %v370, 4
    %v380 = vsel %vm271, 0.0, %v379
    %v381 = vrot.slane %v374, 4
    %v382 = vsel %vm271, 0.0, %v381
    %v383 = vsel %vm271, %v321, %v302
    %v385 = vunpack.c.l.s4 1983009808
    %v386 = vunpack.c.0.s8 %v385
    %v387 = vperm.slane %v383, %v386
    %v388 = vrot.slane %v322, 4
    %v389 = vsel %vm271, %v388, %v320
    %v391 = vunpack.c.l.s4 1983009808
    %v392 = vunpack.c.0.s8 %v391
    %v393 = vperm.slane %v389, %v392
    %v394 = vsel %vm271, %v325, %v314
    %v396 = vunpack.c.l.s4 1983009808
    %v397 = vunpack.c.0.s8 %v396
    %v398 = vperm.slane %v394, %v397
    %v399 = vrot.slane %v326, 4
    %v400 = vsel %vm271, %v399, %v324
    %v402 = vunpack.c.l.s4 1983009808
    %v403 = vunpack.c.0.s8 %v402
    %v404 = vperm.slane %v400, %v403
    %v405 = vrot.slane %v393, 4
    %v406 = vsel %vm271, %v405, %v387
    %v407 = vrot.slane %v387, 4
    %v408 = vsel %vm271, %v393, %v407
    %v410 = vunpack.c.l.s4 1934713408
    %v411 = vunpack.c.0.s8 %v410
    %v412 = vperm.slane %v406, %v411
    %v414 = vunpack.c.l.s4 1934713408
    %v415 = vunpack.c.0.s8 %v414
    %v416 = vperm.slane %v408, %v415
    %v417 = vrot.slane %v404, 4
    %v418 = vsel %vm271, %v417, %v398
    %v419 = vrot.slane %v398, 4
    %v420 = vsel %vm271, %v404, %v419
    %v422 = vunpack.c.l.s4 1934713408
    %v423 = vunpack.c.0.s8 %v422
    %v424 = vperm.slane %v418, %v423
    %v426 = vunpack.c.l.s4 1934713408
    %v427 = vunpack.c.0.s8 %v426
    %v428 = vperm.slane %v420, %v427
    %v429 = vrot.slane %v424, 4
    %v430 = vsel %vm271, %v429, %v412
    %v431 = vrot.slane %v412, 4
    %v432 = vsel %vm271, %v424, %v431
    %v433 = vrot.slane %v428, 4
    %v434 = vsel %vm271, %v433, %v416
    %v435 = vrot.slane %v416, 4
    %v436 = vsel %vm271, %v428, %v435
    %v437 = vsel %vm271, %v377, %v358
    %v439 = vunpack.c.l.s4 1983009808
    %v440 = vunpack.c.0.s8 %v439
    %v441 = vperm.slane %v437, %v440
    %v442 = vrot.slane %v378, 4
    %v443 = vsel %vm271, %v442, %v376
    %v445 = vunpack.c.l.s4 1983009808
    %v446 = vunpack.c.0.s8 %v445
    %v447 = vperm.slane %v443, %v446
    %v448 = vsel %vm271, %v381, %v370
    %v450 = vunpack.c.l.s4 1983009808
    %v451 = vunpack.c.0.s8 %v450
    %v452 = vperm.slane %v448, %v451
    %v453 = vrot.slane %v382, 4
    %v454 = vsel %vm271, %v453, %v380
    %v456 = vunpack.c.l.s4 1983009808
    %v457 = vunpack.c.0.s8 %v456
    %v458 = vperm.slane %v454, %v457
    %v459 = vrot.slane %v447, 4
    %v460 = vsel %vm271, %v459, %v441
    %v461 = vrot.slane %v441, 4
    %v462 = vsel %vm271, %v447, %v461
    %v464 = vunpack.c.l.s4 1934713408
    %v465 = vunpack.c.0.s8 %v464
    %v466 = vperm.slane %v460, %v465
    %v468 = vunpack.c.l.s4 1934713408
    %v469 = vunpack.c.0.s8 %v468
    %v470 = vperm.slane %v462, %v469
    %v471 = vrot.slane %v458, 4
    %v472 = vsel %vm271, %v471, %v452
    %v473 = vrot.slane %v452, 4
    %v474 = vsel %vm271, %v458, %v473
    %v476 = vunpack.c.l.s4 1934713408
    %v477 = vunpack.c.0.s8 %v476
    %v478 = vperm.slane %v472, %v477
    %v480 = vunpack.c.l.s4 1934713408
    %v481 = vunpack.c.0.s8 %v480
    %v482 = vperm.slane %v474, %v481
    %v483 = vrot.slane %v478, 4
    %v484 = vsel %vm271, %v483, %v466
    %v485 = vrot.slane %v466, 4
    %v486 = vsel %vm271, %v478, %v485
    %v487 = vrot.slane %v482, 4
    %v488 = vsel %vm271, %v487, %v470
    %v489 = vrot.slane %v470, 4
    %v490 = vsel %vm271, %v482, %v489
    %493 = vrot.lane.b32.xlu0 %v212, 120
    %v494 = vpop.permute.xlu0 %493
    %495 = vrot.lane.b32.xlu0 %v215, 120
    %v496 = vpop.permute.xlu0 %495
    %499 = vrot.lane.b32.xlu0 %v212, 112
    %v500 = vpop.permute.xlu0 %499
    %501 = vrot.lane.b32.xlu0 %v215, 112
    %v502 = vpop.permute.xlu0 %501
    %505 = vrot.lane.b32.xlu0 %v212, 104
    %v506 = vpop.permute.xlu0 %505
    %507 = vrot.lane.b32.xlu0 %v215, 104
    %v508 = vpop.permute.xlu0 %507
    %v511 = vrot.slane %v500, 4
    %v512 = vsel %vm271, %v511, %v212
    %v513 = vrot.slane %v212, 4
    %v514 = vsel %vm271, %v500, %v513
    %v516 = vunpack.c.l.s4 1983009808
    %v517 = vunpack.c.0.s8 %v516
    %v518 = vperm.slane %v512, %v517
    %v520 = vunpack.c.l.s4 1983009808
    %v521 = vunpack.c.0.s8 %v520
    %v522 = vperm.slane %v514, %v521
    %v523 = vrot.slane %v506, 4
    %v524 = vsel %vm271, %v523, %v494
    %v525 = vrot.slane %v494, 4
    %v526 = vsel %vm271, %v506, %v525
    %v528 = vunpack.c.l.s4 1983009808
    %v529 = vunpack.c.0.s8 %v528
    %v530 = vperm.slane %v524, %v529
    %v532 = vunpack.c.l.s4 1983009808
    %v533 = vunpack.c.0.s8 %v532
    %v534 = vperm.slane %v526, %v533
    %v535 = vrot.slane %v530, 4
    %v536 = vsel %vm271, %v535, %v518
    %v537 = vrot.slane %v518, 4
    %v538 = vsel %vm271, %v530, %v537
    %v540 = vunpack.c.l.s4 1934713408
    %v541 = vunpack.c.0.s8 %v540
    %v542 = vperm.slane %v536, %v541
    %v544 = vunpack.c.l.s4 1934713408
    %v545 = vunpack.c.0.s8 %v544
    %v546 = vperm.slane %v538, %v545
    %v547 = vrot.slane %v534, 4
    %v548 = vsel %vm271, %v547, %v522
    %v549 = vrot.slane %v522, 4
    %v550 = vsel %vm271, %v534, %v549
    %v552 = vunpack.c.l.s4 1934713408
    %v553 = vunpack.c.0.s8 %v552
    %v554 = vperm.slane %v548, %v553
    %v556 = vunpack.c.l.s4 1934713408
    %v557 = vunpack.c.0.s8 %v556
    %v558 = vperm.slane %v550, %v557
    %v559 = vrot.slane %v542, 4
    %v560 = vsel %vm271, 0.0, %v559
    %v561 = vrot.slane %v546, 4
    %v562 = vsel %vm271, 0.0, %v561
    %v563 = vrot.slane %v554, 4
    %v564 = vsel %vm271, 0.0, %v563
    %v565 = vrot.slane %v558, 4
    %v566 = vsel %vm271, 0.0, %v565
    %v567 = vrot.slane %v502, 4
    %v568 = vsel %vm271, %v567, %v215
    %v569 = vrot.slane %v215, 4
    %v570 = vsel %vm271, %v502, %v569
    %v572 = vunpack.c.l.s4 1983009808
    %v573 = vunpack.c.0.s8 %v572
    %v574 = vperm.slane %v568, %v573
    %v576 = vunpack.c.l.s4 1983009808
    %v577 = vunpack.c.0.s8 %v576
    %v578 = vperm.slane %v570, %v577
    %v579 = vrot.slane %v508, 4
    %v580 = vsel %vm271, %v579, %v496
    %v581 = vrot.slane %v496, 4
    %v582 = vsel %vm271, %v508, %v581
    %v584 = vunpack.c.l.s4 1983009808
    %v585 = vunpack.c.0.s8 %v584
    %v586 = vperm.slane %v580, %v585
    %v588 = vunpack.c.l.s4 1983009808
    %v589 = vunpack.c.0.s8 %v588
    %v590 = vperm.slane %v582, %v589
    %v591 = vrot.slane %v586, 4
    %v592 = vsel %vm271, %v591, %v574
    %v593 = vrot.slane %v574, 4
    %v594 = vsel %vm271, %v586, %v593
    %v596 = vunpack.c.l.s4 1934713408
    %v597 = vunpack.c.0.s8 %v596
    %v598 = vperm.slane %v592, %v597
    %v600 = vunpack.c.l.s4 1934713408
    %v601 = vunpack.c.0.s8 %v600
    %v602 = vperm.slane %v594, %v601
    %v603 = vrot.slane %v590, 4
    %v604 = vsel %vm271, %v603, %v578
    %v605 = vrot.slane %v578, 4
    %v606 = vsel %vm271, %v590, %v605
    %v608 = vunpack.c.l.s4 1934713408
    %v609 = vunpack.c.0.s8 %v608
    %v610 = vperm.slane %v604, %v609
    %v612 = vunpack.c.l.s4 1934713408
    %v613 = vunpack.c.0.s8 %v612
    %v614 = vperm.slane %v606, %v613
    %v615 = vrot.slane %v598, 4
    %v616 = vsel %vm271, 0.0, %v615
    %v617 = vrot.slane %v602, 4
    %v618 = vsel %vm271, 0.0, %v617
    %v619 = vrot.slane %v610, 4
    %v620 = vsel %vm271, 0.0, %v619
    %v621 = vrot.slane %v614, 4
    %v622 = vsel %vm271, 0.0, %v621
    %v623 = vsel %vm271, %v561, %v542
    %v625 = vunpack.c.l.s4 1983009808
    %v626 = vunpack.c.0.s8 %v625
    %v627 = vperm.slane %v623, %v626
    %v628 = vrot.slane %v562, 4
    %v629 = vsel %vm271, %v628, %v560
    %v631 = vunpack.c.l.s4 1983009808
    %v632 = vunpack.c.0.s8 %v631
    %v633 = vperm.slane %v629, %v632
    %v634 = vsel %vm271, %v565, %v554
    %v636 = vunpack.c.l.s4 1983009808
    %v637 = vunpack.c.0.s8 %v636
    %v638 = vperm.slane %v634, %v637
    %v639 = vrot.slane %v566, 4
    %v640 = vsel %vm271, %v639, %v564
    %v642 = vunpack.c.l.s4 1983009808
    %v643 = vunpack.c.0.s8 %v642
    %v644 = vperm.slane %v640, %v643
    %v645 = vrot.slane %v633, 4
    %v646 = vsel %vm271, %v645, %v627
    %v647 = vrot.slane %v627, 4
    %v648 = vsel %vm271, %v633, %v647
    %v650 = vunpack.c.l.s4 1934713408
    %v651 = vunpack.c.0.s8 %v650
    %v652 = vperm.slane %v646, %v651
    %v654 = vunpack.c.l.s4 1934713408
    %v655 = vunpack.c.0.s8 %v654
    %v656 = vperm.slane %v648, %v655
    %v657 = vrot.slane %v644, 4
    %v658 = vsel %vm271, %v657, %v638
    %v659 = vrot.slane %v638, 4
    %v660 = vsel %vm271, %v644, %v659
    %v662 = vunpack.c.l.s4 1934713408
    %v663 = vunpack.c.0.s8 %v662
    %v664 = vperm.slane %v658, %v663
    %v666 = vunpack.c.l.s4 1934713408
    %v667 = vunpack.c.0.s8 %v666
    %v668 = vperm.slane %v660, %v667
    %v669 = vrot.slane %v664, 4
    %v670 = vsel %vm271, %v669, %v652
    %v671 = vrot.slane %v652, 4
    %v672 = vsel %vm271, %v664, %v671
    %v673 = vrot.slane %v668, 4
    %v674 = vsel %vm271, %v673, %v656
    %v675 = vrot.slane %v656, 4
    %v676 = vsel %vm271, %v668, %v675
    %v677 = vsel %vm271, %v617, %v598
    %v679 = vunpack.c.l.s4 1983009808
    %v680 = vunpack.c.0.s8 %v679
    %v681 = vperm.slane %v677, %v680
    %v682 = vrot.slane %v618, 4
    %v683 = vsel %vm271, %v682, %v616
    %v685 = vunpack.c.l.s4 1983009808
    %v686 = vunpack.c.0.s8 %v685
    %v687 = vperm.slane %v683, %v686
    %v688 = vsel %vm271, %v621, %v610
    %v690 = vunpack.c.l.s4 1983009808
    %v691 = vunpack.c.0.s8 %v690
    %v692 = vperm.slane %v688, %v691
    %v693 = vrot.slane %v622, 4
    %v694 = vsel %vm271, %v693, %v620
    %v696 = vunpack.c.l.s4 1983009808
    %v697 = vunpack.c.0.s8 %v696
    %v698 = vperm.slane %v694, %v697
    %v699 = vrot.slane %v687, 4
    %v700 = vsel %vm271, %v699, %v681
    %v701 = vrot.slane %v681, 4
    %v702 = vsel %vm271, %v687, %v701
    %v704 = vunpack.c.l.s4 1934713408
    %v705 = vunpack.c.0.s8 %v704
    %v706 = vperm.slane %v700, %v705
    %v708 = vunpack.c.l.s4 1934713408
    %v709 = vunpack.c.0.s8 %v708
    %v710 = vperm.slane %v702, %v709
    %v711 = vrot.slane %v698, 4
    %v712 = vsel %vm271, %v711, %v692
    %v713 = vrot.slane %v692, 4
    %v714 = vsel %vm271, %v698, %v713
    %v716 = vunpack.c.l.s4 1934713408
    %v717 = vunpack.c.0.s8 %v716
    %v718 = vperm.slane %v712, %v717
    %v720 = vunpack.c.l.s4 1934713408
    %v721 = vunpack.c.0.s8 %v720
    %v722 = vperm.slane %v714, %v721
    %v723 = vrot.slane %v718, 4
    %v724 = vsel %vm271, %v723, %v706
    %v725 = vrot.slane %v706, 4
    %v726 = vsel %vm271, %v718, %v725
    %v727 = vrot.slane %v722, 4
    %v728 = vsel %vm271, %v727, %v710
    %v729 = vrot.slane %v710, 4
    %v730 = vsel %vm271, %v722, %v729
    %733 = vrot.lane.b32.xlu0 %v245, 120
    %v734 = vpop.permute.xlu0 %733
    %735 = vrot.lane.b32.xlu0 %v248, 120
    %v736 = vpop.permute.xlu0 %735
    %739 = vrot.lane.b32.xlu0 %v245, 112
    %v740 = vpop.permute.xlu0 %739
    %741 = vrot.lane.b32.xlu0 %v248, 112
    %v742 = vpop.permute.xlu0 %741
    %745 = vrot.lane.b32.xlu0 %v245, 104
    %v746 = vpop.permute.xlu0 %745
    %747 = vrot.lane.b32.xlu0 %v248, 104
    %v748 = vpop.permute.xlu0 %747
    %v751 = vrot.slane %v740, 4
    %v752 = vsel %vm271, %v751, %v245
    %v753 = vrot.slane %v245, 4
    %v754 = vsel %vm271, %v740, %v753
    %v756 = vunpack.c.l.s4 1983009808
    %v757 = vunpack.c.0.s8 %v756
    %v758 = vperm.slane %v752, %v757
    %v760 = vunpack.c.l.s4 1983009808
    %v761 = vunpack.c.0.s8 %v760
    %v762 = vperm.slane %v754, %v761
    %v763 = vrot.slane %v746, 4
    %v764 = vsel %vm271, %v763, %v734
    %v765 = vrot.slane %v734, 4
    %v766 = vsel %vm271, %v746, %v765
    %v768 = vunpack.c.l.s4 1983009808
    %v769 = vunpack.c.0.s8 %v768
    %v770 = vperm.slane %v764, %v769
    %v772 = vunpack.c.l.s4 1983009808
    %v773 = vunpack.c.0.s8 %v772
    %v774 = vperm.slane %v766, %v773
    %v775 = vrot.slane %v770, 4
    %v776 = vsel %vm271, %v775, %v758
    %v777 = vrot.slane %v758, 4
    %v778 = vsel %vm271, %v770, %v777
    %v780 = vunpack.c.l.s4 1934713408
    %v781 = vunpack.c.0.s8 %v780
    %v782 = vperm.slane %v776, %v781
    %v784 = vunpack.c.l.s4 1934713408
    %v785 = vunpack.c.0.s8 %v784
    %v786 = vperm.slane %v778, %v785
    %v787 = vrot.slane %v774, 4
    %v788 = vsel %vm271, %v787, %v762
    %v789 = vrot.slane %v762, 4
    %v790 = vsel %vm271, %v774, %v789
    %v792 = vunpack.c.l.s4 1934713408
    %v793 = vunpack.c.0.s8 %v792
    %v794 = vperm.slane %v788, %v793
    %v796 = vunpack.c.l.s4 1934713408
    %v797 = vunpack.c.0.s8 %v796
    %v798 = vperm.slane %v790, %v797
    %v799 = vrot.slane %v782, 4
    %v800 = vsel %vm271, 0.0, %v799
    %v801 = vrot.slane %v786, 4
    %v802 = vsel %vm271, 0.0, %v801
    %v803 = vrot.slane %v794, 4
    %v804 = vsel %vm271, 0.0, %v803
    %v805 = vrot.slane %v798, 4
    %v806 = vsel %vm271, 0.0, %v805
    %v807 = vrot.slane %v742, 4
    %v808 = vsel %vm271, %v807, %v248
    %v809 = vrot.slane %v248, 4
    %v810 = vsel %vm271, %v742, %v809
    %v812 = vunpack.c.l.s4 1983009808
    %v813 = vunpack.c.0.s8 %v812
    %v814 = vperm.slane %v808, %v813
    %v816 = vunpack.c.l.s4 1983009808
    %v817 = vunpack.c.0.s8 %v816
    %v818 = vperm.slane %v810, %v817
    %v819 = vrot.slane %v748, 4
    %v820 = vsel %vm271, %v819, %v736
    %v821 = vrot.slane %v736, 4
    %v822 = vsel %vm271, %v748, %v821
    %v824 = vunpack.c.l.s4 1983009808
    %v825 = vunpack.c.0.s8 %v824
    %v826 = vperm.slane %v820, %v825
    %v828 = vunpack.c.l.s4 1983009808
    %v829 = vunpack.c.0.s8 %v828
    %v830 = vperm.slane %v822, %v829
    %v831 = vrot.slane %v826, 4
    %v832 = vsel %vm271, %v831, %v814
    %v833 = vrot.slane %v814, 4
    %v834 = vsel %vm271, %v826, %v833
    %v836 = vunpack.c.l.s4 1934713408
    %v837 = vunpack.c.0.s8 %v836
    %v838 = vperm.slane %v832, %v837
    %v840 = vunpack.c.l.s4 1934713408
    %v841 = vunpack.c.0.s8 %v840
    %v842 = vperm.slane %v834, %v841
    %v843 = vrot.slane %v830, 4
    %v844 = vsel %vm271, %v843, %v818
    %v845 = vrot.slane %v818, 4
    %v846 = vsel %vm271, %v830, %v845
    %v848 = vunpack.c.l.s4 1934713408
    %v849 = vunpack.c.0.s8 %v848
    %v850 = vperm.slane %v844, %v849
    %v852 = vunpack.c.l.s4 1934713408
    %v853 = vunpack.c.0.s8 %v852
    %v854 = vperm.slane %v846, %v853
    %v855 = vrot.slane %v838, 4
    %v856 = vsel %vm271, 0.0, %v855
    %v857 = vrot.slane %v842, 4
    %v858 = vsel %vm271, 0.0, %v857
    %v859 = vrot.slane %v850, 4
    %v860 = vsel %vm271, 0.0, %v859
    %v861 = vrot.slane %v854, 4
    %v862 = vsel %vm271, 0.0, %v861
    %v863 = vsel %vm271, %v801, %v782
    %v865 = vunpack.c.l.s4 1983009808
    %v866 = vunpack.c.0.s8 %v865
    %v867 = vperm.slane %v863, %v866
    %v868 = vrot.slane %v802, 4
    %v869 = vsel %vm271, %v868, %v800
    %v871 = vunpack.c.l.s4 1983009808
    %v872 = vunpack.c.0.s8 %v871
    %v873 = vperm.slane %v869, %v872
    %v874 = vsel %vm271, %v805, %v794
    %v876 = vunpack.c.l.s4 1983009808
    %v877 = vunpack.c.0.s8 %v876
    %v878 = vperm.slane %v874, %v877
    %v879 = vrot.slane %v806, 4
    %v880 = vsel %vm271, %v879, %v804
    %v882 = vunpack.c.l.s4 1983009808
    %v883 = vunpack.c.0.s8 %v882
    %v884 = vperm.slane %v880, %v883
    %v885 = vrot.slane %v873, 4
    %v886 = vsel %vm271, %v885, %v867
    %v887 = vrot.slane %v867, 4
    %v888 = vsel %vm271, %v873, %v887
    %v890 = vunpack.c.l.s4 1934713408
    %v891 = vunpack.c.0.s8 %v890
    %v892 = vperm.slane %v886, %v891
    %v894 = vunpack.c.l.s4 1934713408
    %v895 = vunpack.c.0.s8 %v894
    %v896 = vperm.slane %v888, %v895
    %v897 = vrot.slane %v884, 4
    %v898 = vsel %vm271, %v897, %v878
    %v899 = vrot.slane %v878, 4
    %v900 = vsel %vm271, %v884, %v899
    %v902 = vunpack.c.l.s4 1934713408
    %v903 = vunpack.c.0.s8 %v902
    %v904 = vperm.slane %v898, %v903
    %v906 = vunpack.c.l.s4 1934713408
    %v907 = vunpack.c.0.s8 %v906
    %v908 = vperm.slane %v900, %v907
    %v909 = vrot.slane %v904, 4
    %v910 = vsel %vm271, %v909, %v892
    %v911 = vrot.slane %v892, 4
    %v912 = vsel %vm271, %v904, %v911
    %v913 = vrot.slane %v908, 4
    %v914 = vsel %vm271, %v913, %v896
    %v915 = vrot.slane %v896, 4
    %v916 = vsel %vm271, %v908, %v915
    %v917 = vsel %vm271, %v857, %v838
    %v919 = vunpack.c.l.s4 1983009808
    %v920 = vunpack.c.0.s8 %v919
    %v921 = vperm.slane %v917, %v920
    %v922 = vrot.slane %v858, 4
    %v923 = vsel %vm271, %v922, %v856
    %v925 = vunpack.c.l.s4 1983009808
    %v926 = vunpack.c.0.s8 %v925
    %v927 = vperm.slane %v923, %v926
    %v928 = vsel %vm271, %v861, %v850
    %v930 = vunpack.c.l.s4 1983009808
    %v931 = vunpack.c.0.s8 %v930
    %v932 = vperm.slane %v928, %v931
    %v933 = vrot.slane %v862, 4
    %v934 = vsel %vm271, %v933, %v860
    %v936 = vunpack.c.l.s4 1983009808
    %v937 = vunpack.c.0.s8 %v936
    %v938 = vperm.slane %v934, %v937
    %v939 = vrot.slane %v927, 4
    %v940 = vsel %vm271, %v939, %v921
    %v941 = vrot.slane %v921, 4
    %v942 = vsel %vm271, %v927, %v941
    %v944 = vunpack.c.l.s4 1934713408
    %v945 = vunpack.c.0.s8 %v944
    %v946 = vperm.slane %v940, %v945
    %v948 = vunpack.c.l.s4 1934713408
    %v949 = vunpack.c.0.s8 %v948
    %v950 = vperm.slane %v942, %v949
    %v951 = vrot.slane %v938, 4
    %v952 = vsel %vm271, %v951, %v932
    %v953 = vrot.slane %v932, 4
    %v954 = vsel %vm271, %v938, %v953
    %v956 = vunpack.c.l.s4 1934713408
    %v957 = vunpack.c.0.s8 %v956
    %v958 = vperm.slane %v952, %v957
    %v960 = vunpack.c.l.s4 1934713408
    %v961 = vunpack.c.0.s8 %v960
    %v962 = vperm.slane %v954, %v961
    %v963 = vrot.slane %v958, 4
    %v964 = vsel %vm271, %v963, %v946
    %v965 = vrot.slane %v946, 4
    %v966 = vsel %vm271, %v958, %v965
    %v967 = vrot.slane %v962, 4
    %v968 = vsel %vm271, %v967, %v950
    %v969 = vrot.slane %v950, 4
    %v970 = vsel %vm271, %v962, %v969
    %vm971 = vcmask 64512
    %v973 = vsel %vm971, %v430, 0
    %v976 = vsel %vm971, %v670, 0
    %978 = vmatpush.xpose.msra.mxu0 0.0
    %979 = vmatpush.xpose.msra.mxu0 0.0
    %980 = vmatpush.xpose.msra.mxu0 0.0
    %981 = vmatpush.xpose.msra.mxu0 0.0
    %982 = vmatpush.xpose.msra.mxu0 0.0
    %983 = vmatpush.xpose.msra.mxu0 0.0
    %984 = vmatpush.xpose.msra.mxu0 0.0
    %985 = vmatpush.xpose.msra.mxu0 0.0
    %986 = vmatpush.xpose.msra.mxu0 0.0
    %987 = vmatpush.xpose.msra.mxu0 0.0
    %988 = vmatpush.xpose.msra.mxu0 0.0
    %989 = vmatpush.xpose.msra.mxu0 0.0
    %990 = vmatpush.xpose.msra.mxu0 0.0
    %991 = vmatpush.xpose.msra.mxu0 0.0
    %992 = vmatpush.xpose.msra.mxu0 0.0
    %993 = vmatpush.xpose.msra.mxu0 %v976
    %994 = vmatmul.f32.gmra.mxu0 %v973
    %v995 = vpop.f32.mrf.mxu0
    %v996 = vadd.f32 0.0, %v995
    %997 = vdwg.mxu0
    %v999 = vsel %vm971, %v432, 0
    %v1002 = vsel %vm971, %v672, 0
    %1004 = vmatpush.xpose.msra.mxu0 0.0
    %1005 = vmatpush.xpose.msra.mxu0 0.0
    %1006 = vmatpush.xpose.msra.mxu0 0.0
    %1007 = vmatpush.xpose.msra.mxu0 0.0
    %1008 = vmatpush.xpose.msra.mxu0 0.0
    %1009 = vmatpush.xpose.msra.mxu0 0.0
    %1010 = vmatpush.xpose.msra.mxu0 0.0
    %1011 = vmatpush.xpose.msra.mxu0 0.0
    %1012 = vmatpush.xpose.msra.mxu0 0.0
    %1013 = vmatpush.xpose.msra.mxu0 0.0
    %1014 = vmatpush.xpose.msra.mxu0 0.0
    %1015 = vmatpush.xpose.msra.mxu0 0.0
    %1016 = vmatpush.xpose.msra.mxu0 0.0
    %1017 = vmatpush.xpose.msra.mxu0 0.0
    %1018 = vmatpush.xpose.msra.mxu0 0.0
    %1019 = vmatpush.xpose.msra.mxu0 %v1002
    %1020 = vmatmul.f32.gmra.mxu0 %v999
    %v1021 = vpop.f32.mrf.mxu0
    %v1022 = vadd.f32 0.0, %v1021
    %1023 = vdwg.mxu0
    %v1025 = vsel %vm971, %v434, 0
    %v1028 = vsel %vm971, %v674, 0
    %1030 = vmatpush.xpose.msra.mxu0 0.0
    %1031 = vmatpush.xpose.msra.mxu0 0.0
    %1032 = vmatpush.xpose.msra.mxu0 0.0
    %1033 = vmatpush.xpose.msra.mxu0 0.0
    %1034 = vmatpush.xpose.msra.mxu0 0.0
    %1035 = vmatpush.xpose.msra.mxu0 0.0
    %1036 = vmatpush.xpose.msra.mxu0 0.0
    %1037 = vmatpush.xpose.msra.mxu0 0.0
    %1038 = vmatpush.xpose.msra.mxu0 0.0
    %1039 = vmatpush.xpose.msra.mxu0 0.0
    %1040 = vmatpush.xpose.msra.mxu0 0.0
    %1041 = vmatpush.xpose.msra.mxu0 0.0
    %1042 = vmatpush.xpose.msra.mxu0 0.0
    %1043 = vmatpush.xpose.msra.mxu0 0.0
    %1044 = vmatpush.xpose.msra.mxu0 0.0
    %1045 = vmatpush.xpose.msra.mxu0 %v1028
    %1046 = vmatmul.f32.gmra.mxu0 %v1025
    %v1047 = vpop.f32.mrf.mxu0
    %v1048 = vadd.f32 0.0, %v1047
    %1049 = vdwg.mxu0
    %v1051 = vsel %vm971, %v436, 0
    %v1054 = vsel %vm971, %v676, 0
    %1056 = vmatpush.xpose.msra.mxu0 0.0
    %1057 = vmatpush.xpose.msra.mxu0 0.0
    %1058 = vmatpush.xpose.msra.mxu0 0.0
    %1059 = vmatpush.xpose.msra.mxu0 0.0
    %1060 = vmatpush.xpose.msra.mxu0 0.0
    %1061 = vmatpush.xpose.msra.mxu0 0.0
    %1062 = vmatpush.xpose.msra.mxu0 0.0
    %1063 = vmatpush.xpose.msra.mxu0 0.0
    %1064 = vmatpush.xpose.msra.mxu0 0.0
    %1065 = vmatpush.xpose.msra.mxu0 0.0
    %1066 = vmatpush.xpose.msra.mxu0 0.0
    %1067 = vmatpush.xpose.msra.mxu0 0.0
    %1068 = vmatpush.xpose.msra.mxu0 0.0
    %1069 = vmatpush.xpose.msra.mxu0 0.0
    %1070 = vmatpush.xpose.msra.mxu0 0.0
    %1071 = vmatpush.xpose.msra.mxu0 %v1054
    %1072 = vmatmul.f32.gmra.mxu0 %v1051
    %v1073 = vpop.f32.mrf.mxu0
    %v1074 = vadd.f32 0.0, %v1073
    %1075 = vdwg.mxu0
    %v1077 = vsel %vm971, %v484, 0
    %v1080 = vsel %vm971, %v724, 0
    %1082 = vmatpush.xpose.msra.mxu0 0.0
    %1083 = vmatpush.xpose.msra.mxu0 0.0
    %1084 = vmatpush.xpose.msra.mxu0 0.0
    %1085 = vmatpush.xpose.msra.mxu0 0.0
    %1086 = vmatpush.xpose.msra.mxu0 0.0
    %1087 = vmatpush.xpose.msra.mxu0 0.0
    %1088 = vmatpush.xpose.msra.mxu0 0.0
    %1089 = vmatpush.xpose.msra.mxu0 0.0
    %1090 = vmatpush.xpose.msra.mxu0 0.0
    %1091 = vmatpush.xpose.msra.mxu0 0.0
    %1092 = vmatpush.xpose.msra.mxu0 0.0
    %1093 = vmatpush.xpose.msra.mxu0 0.0
    %1094 = vmatpush.xpose.msra.mxu0 0.0
    %1095 = vmatpush.xpose.msra.mxu0 0.0
    %1096 = vmatpush.xpose.msra.mxu0 0.0
    %1097 = vmatpush.xpose.msra.mxu0 %v1080
    %1098 = vmatmul.f32.gmra.mxu0 %v1077
    %v1099 = vpop.f32.mrf.mxu0
    %v1100 = vadd.f32 0.0, %v1099
    %1101 = vdwg.mxu0
    %v1103 = vsel %vm971, %v486, 0
    %v1106 = vsel %vm971, %v726, 0
    %1108 = vmatpush.xpose.msra.mxu0 0.0
    %1109 = vmatpush.xpose.msra.mxu0 0.0
    %1110 = vmatpush.xpose.msra.mxu0 0.0
    %1111 = vmatpush.xpose.msra.mxu0 0.0
    %1112 = vmatpush.xpose.msra.mxu0 0.0
    %1113 = vmatpush.xpose.msra.mxu0 0.0
    %1114 = vmatpush.xpose.msra.mxu0 0.0
    %1115 = vmatpush.xpose.msra.mxu0 0.0
    %1116 = vmatpush.xpose.msra.mxu0 0.0
    %1117 = vmatpush.xpose.msra.mxu0 0.0
    %1118 = vmatpush.xpose.msra.mxu0 0.0
    %1119 = vmatpush.xpose.msra.mxu0 0.0
    %1120 = vmatpush.xpose.msra.mxu0 0.0
    %1121 = vmatpush.xpose.msra.mxu0 0.0
    %1122 = vmatpush.xpose.msra.mxu0 0.0
    %1123 = vmatpush.xpose.msra.mxu0 %v1106
    %1124 = vmatmul.f32.gmra.mxu0 %v1103
    %v1125 = vpop.f32.mrf.mxu0
    %v1126 = vadd.f32 0.0, %v1125
    %1127 = vdwg.mxu0
    %v1129 = vsel %vm971, %v488, 0
    %v1132 = vsel %vm971, %v728, 0
    %1134 = vmatpush.xpose.msra.mxu0 0.0
    %1135 = vmatpush.xpose.msra.mxu0 0.0
    %1136 = vmatpush.xpose.msra.mxu0 0.0
    %1137 = vmatpush.xpose.msra.mxu0 0.0
    %1138 = vmatpush.xpose.msra.mxu0 0.0
    %1139 = vmatpush.xpose.msra.mxu0 0.0
    %1140 = vmatpush.xpose.msra.mxu0 0.0
    %1141 = vmatpush.xpose.msra.mxu0 0.0
    %1142 = vmatpush.xpose.msra.mxu0 0.0
    %1143 = vmatpush.xpose.msra.mxu0 0.0
    %1144 = vmatpush.xpose.msra.mxu0 0.0
    %1145 = vmatpush.xpose.msra.mxu0 0.0
    %1146 = vmatpush.xpose.msra.mxu0 0.0
    %1147 = vmatpush.xpose.msra.mxu0 0.0
    %1148 = vmatpush.xpose.msra.mxu0 0.0
    %1149 = vmatpush.xpose.msra.mxu0 %v1132
    %1150 = vmatmul.f32.gmra.mxu0 %v1129
    %v1151 = vpop.f32.mrf.mxu0
    %v1152 = vadd.f32 0.0, %v1151
    %1153 = vdwg.mxu0
    %v1155 = vsel %vm971, %v490, 0
    %v1158 = vsel %vm971, %v730, 0
    %1160 = vmatpush.xpose.msra.mxu0 0.0
    %1161 = vmatpush.xpose.msra.mxu0 0.0
    %1162 = vmatpush.xpose.msra.mxu0 0.0
    %1163 = vmatpush.xpose.msra.mxu0 0.0
    %1164 = vmatpush.xpose.msra.mxu0 0.0
    %1165 = vmatpush.xpose.msra.mxu0 0.0
    %1166 = vmatpush.xpose.msra.mxu0 0.0
    %1167 = vmatpush.xpose.msra.mxu0 0.0
    %1168 = vmatpush.xpose.msra.mxu0 0.0
    %1169 = vmatpush.xpose.msra.mxu0 0.0
    %1170 = vmatpush.xpose.msra.mxu0 0.0
    %1171 = vmatpush.xpose.msra.mxu0 0.0
    %1172 = vmatpush.xpose.msra.mxu0 0.0
    %1173 = vmatpush.xpose.msra.mxu0 0.0
    %1174 = vmatpush.xpose.msra.mxu0 0.0
    %1175 = vmatpush.xpose.msra.mxu0 %v1158
    %1176 = vmatmul.f32.gmra.mxu0 %v1155
    %v1177 = vpop.f32.mrf.mxu0
    %v1178 = vadd.f32 0.0, %v1177
    %1179 = vdwg.mxu0
    %v1180 = vsel %vm971, %v996, -inf
    %1181 = vmax.xlane.f32.xlu0 %v1180
    %v1182 = vpop.xlane.xlu0 %1181
    %v1183 = vsel %vm971, %v1022, -inf
    %1184 = vmax.xlane.f32.xlu0 %v1183
    %v1185 = vpop.xlane.xlu0 %1184
    %v1186 = vsel %vm971, %v1048, -inf
    %1187 = vmax.xlane.f32.xlu0 %v1186
    %v1188 = vpop.xlane.xlu0 %1187
    %v1189 = vsel %vm971, %v1074, -inf
    %1190 = vmax.xlane.f32.xlu0 %v1189
    %v1191 = vpop.xlane.xlu0 %1190
    %v1192 = vsel %vm971, %v1100, -inf
    %1193 = vmax.xlane.f32.xlu0 %v1192
    %v1194 = vpop.xlane.xlu0 %1193
    %v1195 = vsel %vm971, %v1126, -inf
    %1196 = vmax.xlane.f32.xlu0 %v1195
    %v1197 = vpop.xlane.xlu0 %1196
    %v1198 = vsel %vm971, %v1152, -inf
    %1199 = vmax.xlane.f32.xlu0 %v1198
    %v1200 = vpop.xlane.xlu0 %1199
    %v1201 = vsel %vm971, %v1178, -inf
    %1202 = vmax.xlane.f32.xlu0 %v1201
    %v1203 = vpop.xlane.xlu0 %1202
    %v1204 = vsub.f32 %v996, %v1182
    %v1205 = vsub.f32 %v1022, %v1185
    %v1206 = vsub.f32 %v1048, %v1188
    %v1207 = vsub.f32 %v1074, %v1191
    %v1208 = vsub.f32 %v1100, %v1194
    %v1209 = vsub.f32 %v1126, %v1197
    %v1210 = vsub.f32 %v1152, %v1200
    %v1211 = vsub.f32 %v1178, %v1203
    %v1212 = vmul.f32 %v1204, 1.442695
    %v1213 = vpow.pop %v1212
    %v1214 = vmul.f32 %v1205, 1.442695
    %v1215 = vpow.pop %v1214
    %v1216 = vmul.f32 %v1206, 1.442695
    %v1217 = vpow.pop %v1216
    %v1218 = vmul.f32 %v1207, 1.442695
    %v1219 = vpow.pop %v1218
    %v1220 = vmul.f32 %v1208, 1.442695
    %v1221 = vpow.pop %v1220
    %v1222 = vmul.f32 %v1209, 1.442695
    %v1223 = vpow.pop %v1222
    %v1224 = vmul.f32 %v1210, 1.442695
    %v1225 = vpow.pop %v1224
    %v1226 = vmul.f32 %v1211, 1.442695
    %v1227 = vpow.pop %v1226
    %v1228 = vsel %vm971, %v1213, 0.0
    %1229 = vadd.xlane.f32.xlu0 %v1228
    %v1230 = vpop.xlane.xlu0 %1229
    %v1231 = vsel %vm971, %v1215, 0.0
    %1232 = vadd.xlane.f32.xlu0 %v1231
    %v1233 = vpop.xlane.xlu0 %1232
    %v1234 = vsel %vm971, %v1217, 0.0
    %1235 = vadd.xlane.f32.xlu0 %v1234
    %v1236 = vpop.xlane.xlu0 %1235
    %v1237 = vsel %vm971, %v1219, 0.0
    %1238 = vadd.xlane.f32.xlu0 %v1237
    %v1239 = vpop.xlane.xlu0 %1238
    %v1240 = vsel %vm971, %v1221, 0.0
    %1241 = vadd.xlane.f32.xlu0 %v1240
    %v1242 = vpop.xlane.xlu0 %1241
    %v1243 = vsel %vm971, %v1223, 0.0
    %1244 = vadd.xlane.f32.xlu0 %v1243
    %v1245 = vpop.xlane.xlu0 %1244
    %v1246 = vsel %vm971, %v1225, 0.0
    %1247 = vadd.xlane.f32.xlu0 %v1246
    %v1248 = vpop.xlane.xlu0 %1247
    %v1249 = vsel %vm971, %v1227, 0.0
    %1250 = vadd.xlane.f32.xlu0 %v1249
    %v1251 = vpop.xlane.xlu0 %1250
    %v1252 = vrcp.pop %v1230
    %v1253 = vmul.f32 %v1230, %v1252
    %v1254 = vsub.f32 1.0, %v1253
    %v1255 = vmul.f32 %v1252, %v1254
    %v1256 = vadd.f32 %v1252, %v1255
    %vm1257 = vweird.f32 %v1230
    %vm1258 = vweird.f32 %v1252
    %vm1259 = vmor %vm1257, %vm1258
    %v1260 = vsel %vm1259, %v1252, %v1256
    %v1261 = vand.u32 2147483647, %v1230
    %vm1262 = vcmp.eq.f32.partialorder %v1261, 8.507059e+37
    %v1263 = vand.u32 %v1230, 2147483648
    %v1264 = vor.u32 1.1754944e-38, %v1263
    %v1265 = vsel %vm1262, %v1264, %v1260
    %v1266 = vmul.f32 %v1213, %v1265
    %v1267 = vrcp.pop %v1233
    %v1268 = vmul.f32 %v1233, %v1267
    %v1269 = vsub.f32 1.0, %v1268
    %v1270 = vmul.f32 %v1267, %v1269
    %v1271 = vadd.f32 %v1267, %v1270
    %vm1272 = vweird.f32 %v1233
    %vm1273 = vweird.f32 %v1267
    %vm1274 = vmor %vm1272, %vm1273
    %v1275 = vsel %vm1274, %v1267, %v1271
    %v1276 = vand.u32 2147483647, %v1233
    %vm1277 = vcmp.eq.f32.partialorder %v1276, 8.507059e+37
    %v1278 = vand.u32 %v1233, 2147483648
    %v1279 = vor.u32 1.1754944e-38, %v1278
    %v1280 = vsel %vm1277, %v1279, %v1275
    %v1281 = vmul.f32 %v1215, %v1280
    %v1282 = vrcp.pop %v1236
    %v1283 = vmul.f32 %v1236, %v1282
    %v1284 = vsub.f32 1.0, %v1283
    %v1285 = vmul.f32 %v1282, %v1284
    %v1286 = vadd.f32 %v1282, %v1285
    %vm1287 = vweird.f32 %v1236
    %vm1288 = vweird.f32 %v1282
    %vm1289 = vmor %vm1287, %vm1288
    %v1290 = vsel %vm1289, %v1282, %v1286
    %v1291 = vand.u32 2147483647, %v1236
    %vm1292 = vcmp.eq.f32.partialorder %v1291, 8.507059e+37
    %v1293 = vand.u32 %v1236, 2147483648
    %v1294 = vor.u32 1.1754944e-38, %v1293
    %v1295 = vsel %vm1292, %v1294, %v1290
    %v1296 = vmul.f32 %v1217, %v1295
    %v1297 = vrcp.pop %v1239
    %v1298 = vmul.f32 %v1239, %v1297
    %v1299 = vsub.f32 1.0, %v1298
    %v1300 = vmul.f32 %v1297, %v1299
    %v1301 = vadd.f32 %v1297, %v1300
    %vm1302 = vweird.f32 %v1239
    %vm1303 = vweird.f32 %v1297
    %vm1304 = vmor %vm1302, %vm1303
    %v1305 = vsel %vm1304, %v1297, %v1301
    %v1306 = vand.u32 2147483647, %v1239
    %vm1307 = vcmp.eq.f32.partialorder %v1306, 8.507059e+37
    %v1308 = vand.u32 %v1239, 2147483648
    %v1309 = vor.u32 1.1754944e-38, %v1308
    %v1310 = vsel %vm1307, %v1309, %v1305
    %v1311 = vmul.f32 %v1219, %v1310
    %v1312 = vrcp.pop %v1242
    %v1313 = vmul.f32 %v1242, %v1312
    %v1314 = vsub.f32 1.0, %v1313
    %v1315 = vmul.f32 %v1312, %v1314
    %v1316 = vadd.f32 %v1312, %v1315
    %vm1317 = vweird.f32 %v1242
    %vm1318 = vweird.f32 %v1312
    %vm1319 = vmor %vm1317, %vm1318
    %v1320 = vsel %vm1319, %v1312, %v1316
    %v1321 = vand.u32 2147483647, %v1242
    %vm1322 = vcmp.eq.f32.partialorder %v1321, 8.507059e+37
    %v1323 = vand.u32 %v1242, 2147483648
    %v1324 = vor.u32 1.1754944e-38, %v1323
    %v1325 = vsel %vm1322, %v1324, %v1320
    %v1326 = vmul.f32 %v1221, %v1325
    %v1327 = vrcp.pop %v1245
    %v1328 = vmul.f32 %v1245, %v1327
    %v1329 = vsub.f32 1.0, %v1328
    %v1330 = vmul.f32 %v1327, %v1329
    %v1331 = vadd.f32 %v1327, %v1330
    %vm1332 = vweird.f32 %v1245
    %vm1333 = vweird.f32 %v1327
    %vm1334 = vmor %vm1332, %vm1333
    %v1335 = vsel %vm1334, %v1327, %v1331
    %v1336 = vand.u32 2147483647, %v1245
    %vm1337 = vcmp.eq.f32.partialorder %v1336, 8.507059e+37
    %v1338 = vand.u32 %v1245, 2147483648
    %v1339 = vor.u32 1.1754944e-38, %v1338
    %v1340 = vsel %vm1337, %v1339, %v1335
    %v1341 = vmul.f32 %v1223, %v1340
    %v1342 = vrcp.pop %v1248
    %v1343 = vmul.f32 %v1248, %v1342
    %v1344 = vsub.f32 1.0, %v1343
    %v1345 = vmul.f32 %v1342, %v1344
    %v1346 = vadd.f32 %v1342, %v1345
    %vm1347 = vweird.f32 %v1248
    %vm1348 = vweird.f32 %v1342
    %vm1349 = vmor %vm1347, %vm1348
    %v1350 = vsel %vm1349, %v1342, %v1346
    %v1351 = vand.u32 2147483647, %v1248
    %vm1352 = vcmp.eq.f32.partialorder %v1351, 8.507059e+37
    %v1353 = vand.u32 %v1248, 2147483648
    %v1354 = vor.u32 1.1754944e-38, %v1353
    %v1355 = vsel %vm1352, %v1354, %v1350
    %v1356 = vmul.f32 %v1225, %v1355
    %v1357 = vrcp.pop %v1251
    %v1358 = vmul.f32 %v1251, %v1357
    %v1359 = vsub.f32 1.0, %v1358
    %v1360 = vmul.f32 %v1357, %v1359
    %v1361 = vadd.f32 %v1357, %v1360
    %vm1362 = vweird.f32 %v1251
    %vm1363 = vweird.f32 %v1357
    %vm1364 = vmor %vm1362, %vm1363
    %v1365 = vsel %vm1364, %v1357, %v1361
    %v1366 = vand.u32 2147483647, %v1251
    %vm1367 = vcmp.eq.f32.partialorder %v1366, 8.507059e+37
    %v1368 = vand.u32 %v1251, 2147483648
    %v1369 = vor.u32 1.1754944e-38, %v1368
    %v1370 = vsel %vm1367, %v1369, %v1365
    %v1371 = vmul.f32 %v1227, %v1370
    %v1373 = vsel %vm971, %v1266, 0
    %1375 = vmatpush.msra.mxu0 0.0
    %1376 = vmatpush.msra.mxu0 0.0
    %1377 = vmatpush.msra.mxu0 0.0
    %1378 = vmatpush.msra.mxu0 0.0
    %1379 = vmatpush.msra.mxu0 0.0
    %1380 = vmatpush.msra.mxu0 0.0
    %1381 = vmatpush.msra.mxu0 0.0
    %1382 = vmatpush.msra.mxu0 0.0
    %1383 = vmatpush.msra.mxu0 0.0
    %1384 = vmatpush.msra.mxu0 0.0
    %1385 = vmatpush.msra.mxu0 0.0
    %1386 = vmatpush.msra.mxu0 0.0
    %1387 = vmatpush.msra.mxu0 0.0
    %1388 = vmatpush.msra.mxu0 0.0
    %1389 = vmatpush.msra.mxu0 0.0
    %1390 = vmatpush.msra.mxu0 %v910
    %1391 = vmatmul.f32.gmra.mxu0 %v1373
    %v1392 = vpop.f32.mrf.mxu0
    %v1393 = vadd.f32 0.0, %v1392
    %1394 = vdwg.mxu0
    %v1396 = vsel %vm971, %v1281, 0
    %1398 = vmatpush.msra.mxu0 0.0
    %1399 = vmatpush.msra.mxu0 0.0
    %1400 = vmatpush.msra.mxu0 0.0
    %1401 = vmatpush.msra.mxu0 0.0
    %1402 = vmatpush.msra.mxu0 0.0
    %1403 = vmatpush.msra.mxu0 0.0
    %1404 = vmatpush.msra.mxu0 0.0
    %1405 = vmatpush.msra.mxu0 0.0
    %1406 = vmatpush.msra.mxu0 0.0
    %1407 = vmatpush.msra.mxu0 0.0
    %1408 = vmatpush.msra.mxu0 0.0
    %1409 = vmatpush.msra.mxu0 0.0
    %1410 = vmatpush.msra.mxu0 0.0
    %1411 = vmatpush.msra.mxu0 0.0
    %1412 = vmatpush.msra.mxu0 0.0
    %1413 = vmatpush.msra.mxu0 %v912
    %1414 = vmatmul.f32.gmra.mxu0 %v1396
    %v1415 = vpop.f32.mrf.mxu0
    %v1416 = vadd.f32 0.0, %v1415
    %1417 = vdwg.mxu0
    %v1419 = vsel %vm971, %v1296, 0
    %1421 = vmatpush.msra.mxu0 0.0
    %1422 = vmatpush.msra.mxu0 0.0
    %1423 = vmatpush.msra.mxu0 0.0
    %1424 = vmatpush.msra.mxu0 0.0
    %1425 = vmatpush.msra.mxu0 0.0
    %1426 = vmatpush.msra.mxu0 0.0
    %1427 = vmatpush.msra.mxu0 0.0
    %1428 = vmatpush.msra.mxu0 0.0
    %1429 = vmatpush.msra.mxu0 0.0
    %1430 = vmatpush.msra.mxu0 0.0
    %1431 = vmatpush.msra.mxu0 0.0
    %1432 = vmatpush.msra.mxu0 0.0
    %1433 = vmatpush.msra.mxu0 0.0
    %1434 = vmatpush.msra.mxu0 0.0
    %1435 = vmatpush.msra.mxu0 0.0
    %1436 = vmatpush.msra.mxu0 %v914
    %1437 = vmatmul.f32.gmra.mxu0 %v1419
    %v1438 = vpop.f32.mrf.mxu0
    %v1439 = vadd.f32 0.0, %v1438
    %1440 = vdwg.mxu0
    %v1442 = vsel %vm971, %v1311, 0
    %1444 = vmatpush.msra.mxu0 0.0
    %1445 = vmatpush.msra.mxu0 0.0
    %1446 = vmatpush.msra.mxu0 0.0
    %1447 = vmatpush.msra.mxu0 0.0
    %1448 = vmatpush.msra.mxu0 0.0
    %1449 = vmatpush.msra.mxu0 0.0
    %1450 = vmatpush.msra.mxu0 0.0
    %1451 = vmatpush.msra.mxu0 0.0
    %1452 = vmatpush.msra.mxu0 0.0
    %1453 = vmatpush.msra.mxu0 0.0
    %1454 = vmatpush.msra.mxu0 0.0
    %1455 = vmatpush.msra.mxu0 0.0
    %1456 = vmatpush.msra.mxu0 0.0
    %1457 = vmatpush.msra.mxu0 0.0
    %1458 = vmatpush.msra.mxu0 0.0
    %1459 = vmatpush.msra.mxu0 %v916
    %1460 = vmatmul.f32.gmra.mxu0 %v1442
    %v1461 = vpop.f32.mrf.mxu0
    %v1462 = vadd.f32 0.0, %v1461
    %1463 = vdwg.mxu0
    %v1465 = vsel %vm971, %v1326, 0
    %1467 = vmatpush.msra.mxu0 0.0
    %1468 = vmatpush.msra.mxu0 0.0
    %1469 = vmatpush.msra.mxu0 0.0
    %1470 = vmatpush.msra.mxu0 0.0
    %1471 = vmatpush.msra.mxu0 0.0
    %1472 = vmatpush.msra.mxu0 0.0
    %1473 = vmatpush.msra.mxu0 0.0
    %1474 = vmatpush.msra.mxu0 0.0
    %1475 = vmatpush.msra.mxu0 0.0
    %1476 = vmatpush.msra.mxu0 0.0
    %1477 = vmatpush.msra.mxu0 0.0
    %1478 = vmatpush.msra.mxu0 0.0
    %1479 = vmatpush.msra.mxu0 0.0
    %1480 = vmatpush.msra.mxu0 0.0
    %1481 = vmatpush.msra.mxu0 0.0
    %1482 = vmatpush.msra.mxu0 %v964
    %1483 = vmatmul.f32.gmra.mxu0 %v1465
    %v1484 = vpop.f32.mrf.mxu0
    %v1485 = vadd.f32 0.0, %v1484
    %1486 = vdwg.mxu0
    %v1488 = vsel %vm971, %v1341, 0
    %1490 = vmatpush.msra.mxu0 0.0
    %1491 = vmatpush.msra.mxu0 0.0
    %1492 = vmatpush.msra.mxu0 0.0
    %1493 = vmatpush.msra.mxu0 0.0
    %1494 = vmatpush.msra.mxu0 0.0
    %1495 = vmatpush.msra.mxu0 0.0
    %1496 = vmatpush.msra.mxu0 0.0
    %1497 = vmatpush.msra.mxu0 0.0
    %1498 = vmatpush.msra.mxu0 0.0
    %1499 = vmatpush.msra.mxu0 0.0
    %1500 = vmatpush.msra.mxu0 0.0
    %1501 = vmatpush.msra.mxu0 0.0
    %1502 = vmatpush.msra.mxu0 0.0
    %1503 = vmatpush.msra.mxu0 0.0
    %1504 = vmatpush.msra.mxu0 0.0
    %1505 = vmatpush.msra.mxu0 %v966
    %1506 = vmatmul.f32.gmra.mxu0 %v1488
    %v1507 = vpop.f32.mrf.mxu0
    %v1508 = vadd.f32 0.0, %v1507
    %1509 = vdwg.mxu0
    %v1511 = vsel %vm971, %v1356, 0
    %1513 = vmatpush.msra.mxu0 0.0
    %1514 = vmatpush.msra.mxu0 0.0
    %1515 = vmatpush.msra.mxu0 0.0
    %1516 = vmatpush.msra.mxu0 0.0
    %1517 = vmatpush.msra.mxu0 0.0
    %1518 = vmatpush.msra.mxu0 0.0
    %1519 = vmatpush.msra.mxu0 0.0
    %1520 = vmatpush.msra.mxu0 0.0
    %1521 = vmatpush.msra.mxu0 0.0
    %1522 = vmatpush.msra.mxu0 0.0
    %1523 = vmatpush.msra.mxu0 0.0
    %1524 = vmatpush.msra.mxu0 0.0
    %1525 = vmatpush.msra.mxu0 0.0
    %1526 = vmatpush.msra.mxu0 0.0
    %1527 = vmatpush.msra.mxu0 0.0
    %1528 = vmatpush.msra.mxu0 %v968
    %1529 = vmatmul.f32.gmra.mxu0 %v1511
    %v1530 = vpop.f32.mrf.mxu0
    %v1531 = vadd.f32 0.0, %v1530
    %1532 = vdwg.mxu0
    %v1534 = vsel %vm971, %v1371, 0
    %1536 = vmatpush.msra.mxu0 0.0
    %1537 = vmatpush.msra.mxu0 0.0
    %1538 = vmatpush.msra.mxu0 0.0
    %1539 = vmatpush.msra.mxu0 0.0
    %1540 = vmatpush.msra.mxu0 0.0
    %1541 = vmatpush.msra.mxu0 0.0
    %1542 = vmatpush.msra.mxu0 0.0
    %1543 = vmatpush.msra.mxu0 0.0
    %1544 = vmatpush.msra.mxu0 0.0
    %1545 = vmatpush.msra.mxu0 0.0
    %1546 = vmatpush.msra.mxu0 0.0
    %1547 = vmatpush.msra.mxu0 0.0
    %1548 = vmatpush.msra.mxu0 0.0
    %1549 = vmatpush.msra.mxu0 0.0
    %1550 = vmatpush.msra.mxu0 0.0
    %1551 = vmatpush.msra.mxu0 %v970
    %1552 = vmatmul.f32.gmra.mxu0 %v1534
    %v1553 = vpop.f32.mrf.mxu0
    %v1554 = vadd.f32 0.0, %v1553
    %1555 = vdwg.mxu0
    %v1556 = vrot.slane %v1439, 4
    %v1557 = vsel %vm271, %v1556, %v1393
    %v1558 = vrot.slane %v1393, 4
    %v1559 = vsel %vm271, %v1439, %v1558
    %v1561 = vunpack.c.l.s4 1983009808
    %v1562 = vunpack.c.0.s8 %v1561
    %v1563 = vperm.slane %v1557, %v1562
    %v1565 = vunpack.c.l.s4 1983009808
    %v1566 = vunpack.c.0.s8 %v1565
    %v1567 = vperm.slane %v1559, %v1566
    %v1568 = vrot.slane %v1462, 4
    %v1569 = vsel %vm271, %v1568, %v1416
    %v1570 = vrot.slane %v1416, 4
    %v1571 = vsel %vm271, %v1462, %v1570
    %v1573 = vunpack.c.l.s4 1983009808
    %v1574 = vunpack.c.0.s8 %v1573
    %v1575 = vperm.slane %v1569, %v1574
    %v1577 = vunpack.c.l.s4 1983009808
    %v1578 = vunpack.c.0.s8 %v1577
    %v1579 = vperm.slane %v1571, %v1578
    %v1580 = vrot.slane %v1575, 4
    %v1581 = vsel %vm271, %v1580, %v1563
    %v1582 = vrot.slane %v1563, 4
    %v1583 = vsel %vm271, %v1575, %v1582
    %v1585 = vunpack.c.l.s4 1934713408
    %v1586 = vunpack.c.0.s8 %v1585
    %v1587 = vperm.slane %v1581, %v1586
    %v1589 = vunpack.c.l.s4 1934713408
    %v1590 = vunpack.c.0.s8 %v1589
    %v1591 = vperm.slane %v1583, %v1590
    %v1592 = vrot.slane %v1579, 4
    %v1593 = vsel %vm271, %v1592, %v1567
    %v1594 = vrot.slane %v1567, 4
    %v1595 = vsel %vm271, %v1579, %v1594
    %v1597 = vunpack.c.l.s4 1934713408
    %v1598 = vunpack.c.0.s8 %v1597
    %v1599 = vperm.slane %v1593, %v1598
    %v1601 = vunpack.c.l.s4 1934713408
    %v1602 = vunpack.c.0.s8 %v1601
    %v1603 = vperm.slane %v1595, %v1602
    %v1604 = vrot.slane %v1587, 4
    %v1605 = vsel %vm271, 0.0, %v1604
    %v1606 = vrot.slane %v1591, 4
    %v1607 = vsel %vm271, 0.0, %v1606
    %v1608 = vrot.slane %v1599, 4
    %v1609 = vsel %vm271, 0.0, %v1608
    %v1610 = vrot.slane %v1603, 4
    %v1611 = vsel %vm271, 0.0, %v1610
    %v1612 = vrot.slane %v1531, 4
    %v1613 = vsel %vm271, %v1612, %v1485
    %v1614 = vrot.slane %v1485, 4
    %v1615 = vsel %vm271, %v1531, %v1614
    %v1617 = vunpack.c.l.s4 1983009808
    %v1618 = vunpack.c.0.s8 %v1617
    %v1619 = vperm.slane %v1613, %v1618
    %v1621 = vunpack.c.l.s4 1983009808
    %v1622 = vunpack.c.0.s8 %v1621
    %v1623 = vperm.slane %v1615, %v1622
    %v1624 = vrot.slane %v1554, 4
    %v1625 = vsel %vm271, %v1624, %v1508
    %v1626 = vrot.slane %v1508, 4
    %v1627 = vsel %vm271, %v1554, %v1626
    %v1629 = vunpack.c.l.s4 1983009808
    %v1630 = vunpack.c.0.s8 %v1629
    %v1631 = vperm.slane %v1625, %v1630
    %v1633 = vunpack.c.l.s4 1983009808
    %v1634 = vunpack.c.0.s8 %v1633
    %v1635 = vperm.slane %v1627, %v1634
    %v1636 = vrot.slane %v1631, 4
    %v1637 = vsel %vm271, %v1636, %v1619
    %v1638 = vrot.slane %v1619, 4
    %v1639 = vsel %vm271, %v1631, %v1638
    %v1641 = vunpack.c.l.s4 1934713408
    %v1642 = vunpack.c.0.s8 %v1641
    %v1643 = vperm.slane %v1637, %v1642
    %v1645 = vunpack.c.l.s4 1934713408
    %v1646 = vunpack.c.0.s8 %v1645
    %v1647 = vperm.slane %v1639, %v1646
    %v1648 = vrot.slane %v1635, 4
    %v1649 = vsel %vm271, %v1648, %v1623
    %v1650 = vrot.slane %v1623, 4
    %v1651 = vsel %vm271, %v1635, %v1650
    %v1653 = vunpack.c.l.s4 1934713408
    %v1654 = vunpack.c.0.s8 %v1653
    %v1655 = vperm.slane %v1649, %v1654
    %v1657 = vunpack.c.l.s4 1934713408
    %v1658 = vunpack.c.0.s8 %v1657
    %v1659 = vperm.slane %v1651, %v1658
    %v1660 = vrot.slane %v1643, 4
    %v1661 = vsel %vm271, 0.0, %v1660
    %v1662 = vrot.slane %v1647, 4
    %v1663 = vsel %vm271, 0.0, %v1662
    %v1664 = vrot.slane %v1655, 4
    %v1665 = vsel %vm271, 0.0, %v1664
    %v1666 = vrot.slane %v1659, 4
    %v1667 = vsel %vm271, 0.0, %v1666
    %v1668 = vsel %vm271, %v1606, %v1587
    %v1670 = vunpack.c.l.s4 1983009808
    %v1671 = vunpack.c.0.s8 %v1670
    %v1672 = vperm.slane %v1668, %v1671
    %v1673 = vrot.slane %v1607, 4
    %v1674 = vsel %vm271, %v1673, %v1605
    %v1676 = vunpack.c.l.s4 1983009808
    %v1677 = vunpack.c.0.s8 %v1676
    %v1678 = vperm.slane %v1674, %v1677
    %v1679 = vsel %vm271, %v1610, %v1599
    %v1681 = vunpack.c.l.s4 1983009808
    %v1682 = vunpack.c.0.s8 %v1681
    %v1683 = vperm.slane %v1679, %v1682
    %v1684 = vrot.slane %v1611, 4
    %v1685 = vsel %vm271, %v1684, %v1609
    %v1687 = vunpack.c.l.s4 1983009808
    %v1688 = vunpack.c.0.s8 %v1687
    %v1689 = vperm.slane %v1685, %v1688
    %v1690 = vrot.slane %v1678, 4
    %v1691 = vsel %vm271, %v1690, %v1672
    %v1692 = vrot.slane %v1672, 4
    %v1693 = vsel %vm271, %v1678, %v1692
    %v1695 = vunpack.c.l.s4 1934713408
    %v1696 = vunpack.c.0.s8 %v1695
    %v1697 = vperm.slane %v1691, %v1696
    %v1699 = vunpack.c.l.s4 1934713408
    %v1700 = vunpack.c.0.s8 %v1699
    %v1701 = vperm.slane %v1693, %v1700
    %v1702 = vrot.slane %v1689, 4
    %v1703 = vsel %vm271, %v1702, %v1683
    %v1704 = vrot.slane %v1683, 4
    %v1705 = vsel %vm271, %v1689, %v1704
    %v1707 = vunpack.c.l.s4 1934713408
    %v1708 = vunpack.c.0.s8 %v1707
    %v1709 = vperm.slane %v1703, %v1708
    %v1711 = vunpack.c.l.s4 1934713408
    %v1712 = vunpack.c.0.s8 %v1711
    %v1713 = vperm.slane %v1705, %v1712
    %v1714 = vrot.slane %v1709, 4
    %v1715 = vsel %vm271, %v1714, %v1697
    %v1716 = vrot.slane %v1697, 4
    %v1717 = vsel %vm271, %v1709, %v1716
    %v1718 = vrot.slane %v1713, 4
    %v1719 = vsel %vm271, %v1718, %v1701
    %v1720 = vrot.slane %v1701, 4
    %v1721 = vsel %vm271, %v1713, %v1720
    %v1722 = vsel %vm271, %v1662, %v1643
    %v1724 = vunpack.c.l.s4 1983009808
    %v1725 = vunpack.c.0.s8 %v1724
    %v1726 = vperm.slane %v1722, %v1725
    %v1727 = vrot.slane %v1663, 4
    %v1728 = vsel %vm271, %v1727, %v1661
    %v1730 = vunpack.c.l.s4 1983009808
    %v1731 = vunpack.c.0.s8 %v1730
    %v1732 = vperm.slane %v1728, %v1731
    %v1733 = vsel %vm271, %v1666, %v1655
    %v1735 = vunpack.c.l.s4 1983009808
    %v1736 = vunpack.c.0.s8 %v1735
    %v1737 = vperm.slane %v1733, %v1736
    %v1738 = vrot.slane %v1667, 4
    %v1739 = vsel %vm271, %v1738, %v1665
    %v1741 = vunpack.c.l.s4 1983009808
    %v1742 = vunpack.c.0.s8 %v1741
    %v1743 = vperm.slane %v1739, %v1742
    %v1744 = vrot.slane %v1732, 4
    %v1745 = vsel %vm271, %v1744, %v1726
    %v1746 = vrot.slane %v1726, 4
    %v1747 = vsel %vm271, %v1732, %v1746
    %v1749 = vunpack.c.l.s4 1934713408
    %v1750 = vunpack.c.0.s8 %v1749
    %v1751 = vperm.slane %v1745, %v1750
    %v1753 = vunpack.c.l.s4 1934713408
    %v1754 = vunpack.c.0.s8 %v1753
    %v1755 = vperm.slane %v1747, %v1754
    %v1756 = vrot.slane %v1743, 4
    %v1757 = vsel %vm271, %v1756, %v1737
    %v1758 = vrot.slane %v1737, 4
    %v1759 = vsel %vm271, %v1743, %v1758
    %v1761 = vunpack.c.l.s4 1934713408
    %v1762 = vunpack.c.0.s8 %v1761
    %v1763 = vperm.slane %v1757, %v1762
    %v1765 = vunpack.c.l.s4 1934713408
    %v1766 = vunpack.c.0.s8 %v1765
    %v1767 = vperm.slane %v1759, %v1766
    %v1768 = vrot.slane %v1763, 4
    %v1769 = vsel %vm271, %v1768, %v1751
    %v1770 = vrot.slane %v1751, 4
    %v1771 = vsel %vm271, %v1763, %v1770
    %v1772 = vrot.slane %v1767, 4
    %v1773 = vsel %vm271, %v1772, %v1755
    %v1774 = vrot.slane %v1755, 4
    %v1775 = vsel %vm271, %v1767, %v1774
    %1778 = vrot.lane.b32.xlu0 %v1717, 8
    %v1779 = vpop.permute.xlu0 %1778
    %1780 = vrot.lane.b32.xlu0 %v1771, 8
    %v1781 = vpop.permute.xlu0 %1780
    %1786 = vrot.lane.b32.xlu0 %v1719, 16
    %v1787 = vpop.permute.xlu0 %1786
    %1788 = vrot.lane.b32.xlu0 %v1773, 16
    %v1789 = vpop.permute.xlu0 %1788
    %1794 = vrot.lane.b32.xlu0 %v1721, 24
    %v1795 = vpop.permute.xlu0 %1794
    %1796 = vrot.lane.b32.xlu0 %v1775, 24
    %v1797 = vpop.permute.xlu0 %1796
    %v1800 = vsel %vm971, %v1715, %v1779
    %v1801 = vsel %vm971, %v1769, %v1781
    %vm1802 = vcmask 130048
    %v1803 = vsel %vm1802, %v1800, %v1787
    %v1804 = vsel %vm1802, %v1801, %v1789
    %vm1805 = vcmask 195584
    %v1806 = vsel %vm1805, %v1803, %v1795
    %v1807 = vsel %vm1805, %v1804, %v1797
    %v1808 = vld [vmem:[#allocation13] sm:$0xff]
    %v1809 = vld [vmem:[#allocation13 + $0x8] sm:$0xff]
    %v1810 = vld [vmem:[#allocation13 + $0x10] sm:$0xff]
    %v1811 = vld [vmem:[#allocation13 + $0x18] sm:$0xff]
    %v1813 = vsel %vm152, %v1806, 0
    %v1816 = vsel %vm152, %v1807, 0
    %1818 = vmatpush.msra.mxu0 0.0
    %1819 = vmatpush.msra.mxu0 0.0
    %1820 = vmatpush.msra.mxu0 0.0
    %1821 = vmatpush.msra.mxu0 0.0
    %1822 = vmatpush.msra.mxu0 0.0
    %1823 = vmatpush.msra.mxu0 0.0
    %1824 = vmatpush.msra.mxu0 0.0
    %1825 = vmatpush.msra.mxu0 0.0
    %1826 = vmatpush.msra.mxu0 0.0
    %1827 = vmatpush.msra.mxu0 0.0
    %1828 = vmatpush.msra.mxu0 0.0
    %1829 = vmatpush.msra.mxu0 0.0
    %1830 = vmatpush.msra.mxu0 %v1811
    %1831 = vmatpush.msra.mxu0 %v1810
    %1832 = vmatpush.msra.mxu0 %v1809
    %1833 = vmatpush.msra.mxu0 %v1808
    %1834 = vmatmul.f32.gmra.mxu0 %v1813
    %v1835 = vpop.f32.mrf.mxu0
    %v1836 = vadd.f32 0.0, %v1835
    %1837 = vmatmul.f32.gmra.mxu0 %v1816
    %v1838 = vpop.f32.mrf.mxu0
    %v1839 = vadd.f32 0.0, %v1838
    %1840 = vdwg.mxu0
    %v1841 = vadd.f32 %v1836, %v142
    %v1842 = vadd.f32 %v1839, %v143
    %v1843 = vsel %vm152, %v1841, 0.0
    %1844 = vadd.xlane.f32.xlu0 %v1843
    %v1845 = vpop.xlane.xlu0 %1844
    %v1846 = vsel %vm152, %v1842, 0.0
    %1847 = vadd.xlane.f32.xlu0 %v1846
    %v1848 = vpop.xlane.xlu0 %1847
    %v1849 = vrcp.pop 32.0
    %v1850 = vmul.f32 32.0, %v1849
    %v1851 = vsub.f32 1.0, %v1850
    %v1852 = vmul.f32 %v1849, %v1851
    %v1853 = vadd.f32 %v1849, %v1852
    %vm1854 = vweird.f32 %v1849
    %v1855 = vsel %vm1854, %v1849, %v1853
    %v1856 = vmul.f32 %v1845, %v1855
    %v1857 = vmul.f32 %v1848, %v1855
    %v1858 = vsub.f32 %v1841, %v1856
    %v1859 = vsub.f32 %v1842, %v1857
    %v1860 = vmul.f32 %v1858, %v1858
    %v1861 = vmul.f32 %v1859, %v1859
    %v1862 = vsel %vm152, %v1860, 0.0
    %1863 = vadd.xlane.f32.xlu0 %v1862
    %v1864 = vpop.xlane.xlu0 %1863
    %v1865 = vsel %vm152, %v1861, 0.0
    %1866 = vadd.xlane.f32.xlu0 %v1865
    %v1867 = vpop.xlane.xlu0 %1866
    %v1868 = vmul.f32 %v1864, %v1855
    %v1869 = vmul.f32 %v1867, %v1855
    %v1870 = vadd.f32 %v1868, 1e-06
    %v1871 = vadd.f32 %v1869, 1e-06
    %v1872 = vrsqrt.pop %v1870
    %v1873 = vmul.f32 %v1872, %v1870
    %v1874 = vmul.f32 %v1873, %v1872
    %v1875 = vmul.f32 0.5, %v1874
    %v1876 = vsub.f32 1.5, %v1875
    %v1877 = vmul.f32 %v1872, %v1876
    %vm1878 = vweird.f32 %v1870
    %vm1879 = vweird.f32 %v1872
    %vm1880 = vmor %vm1878, %vm1879
    %v1881 = vsel %vm1880, %v1872, %v1877
    %v1882 = vrsqrt.pop %v1871
    %v1883 = vmul.f32 %v1882, %v1871
    %v1884 = vmul.f32 %v1883, %v1882
    %v1885 = vmul.f32 0.5, %v1884
    %v1886 = vsub.f32 1.5, %v1885
    %v1887 = vmul.f32 %v1882, %v1886
    %vm1888 = vweird.f32 %v1871
    %vm1889 = vweird.f32 %v1882
    %vm1890 = vmor %vm1888, %vm1889
    %v1891 = vsel %vm1890, %v1882, %v1887
    %v1892 = vmul.f32 %v1858, %v1881
    %v1893 = vmul.f32 %v1859, %v1891
    %v1894 = vld [vmem:[%s7] sm:$0x1]
    %v1896 = vperm.slane %v1894, 0
    %v1898 = vmul.f32 %v1892, %v1896
    %v1899 = vmul.f32 %v1893, %v1896
    %v1900 = vld [vmem:[%s8] sm:$0x1]
    %v1902 = vperm.slane %v1900, 0
    %v1904 = vadd.f32 %v1898, %v1902
    %v1905 = vadd.f32 %v1899, %v1902
    %1906 = vst.msk [vmem:[#allocation14] sm:$0xff] %vm152, %v1904
    %1907 = vst.msk [vmem:[#allocation14 + $0x8] sm:$0xff] %vm152, %v1905
    // Predicated region
    $region66: #{tpu_custom_call.1} parent=1 // pred_check
      _
    $region67: #{tpu_custom_call.1} parent=1 // pred_check_branch
      %1909 = sbr.rel (0) target = $region69
    $region68: #{tpu_custom_call.1} parent=1 // pred_region
      %1911 = vsyncadd [#allocation4], 0
      %s1912 = sshll.u32 [#allocation14], 4
      %s1913 = int_to_ptr.vmem [resolvable:$true] %s1912
      %s1914 = sshll.u32 %s9, 4
      %s1915 = int_to_ptr.hbm [resolvable:$true] %s1914
      %1920 = dma.vmem_to_hbm [thread:$0]  %s1913, 256, %s1915, [#allocation4], 128, 128, 8
    $region69: #{tpu_custom_call.1} parent=1 // pred_fallthru
      _
    // Predicated region
    $region70: #{tpu_custom_call.1} parent=1 // pred_check
      _
    $region71: #{tpu_custom_call.1} parent=1 // pred_check_branch
      %1922 = sbr.rel (0) target = $region73
    $region72: #{tpu_custom_call.1} parent=1 // pred_region
      %1924 = dma.done [#allocation4], 256
    $region73: #{tpu_custom_call.1} parent=1 // pred_fallthru
      _
    %1925 = vsyncpa [#allocation3], 1
    %1926 = vsyncpa [#allocation6], 1
    %1927 = vsyncpa [#allocation9], 1
    %1928 = vsyncpa [#allocation12], 1
    %1929 = vsyncpa [#allocation4], 1

</llo_original>
